<compile_context>
chip_gen: v7x
topology: tpu7x:2x2x1
jax: 0.10.0
libtpu: 0.0.40
codegen_flags: <defaults>
</compile_context>

<pallas_src>
import jax
import jax.numpy as jnp
from jax import lax
from jax.experimental import pallas as pl
from jax.experimental.pallas import tpu as pltpu

LEARNING_RATE = 0.0003            # RMSprop hyperparam — optimizer only, not forward
NUM_NEURONS_PER_ACTION = 10
TIMESTEPS = 100
BETA = 0.95
THRESHOLD = 1.0                   # snn.Leaky default threshold

_UNROLL = 8                       # steps per group == one full (8,128) f32 store tile


def _actor_rollout_kernel(xs_ref, w1_ref, b1_ref, w2_ref, b2_ref, mem0_ref,
                          spk1_ref, spk2_ref, mem2_ref, cur1_ref):
    """Fused Tp-step rollout: batched fc1, then unrolled-by-8 recurrent loop."""
    Tp = xs_ref.shape[0]
    U = _UNROLL

    # fc1 for every timestep at once (no recurrent dependence): one MXU matmul
    # replaces Tp tiny matvecs inside the loop.
    cur1_ref[...] = (
        jnp.dot(xs_ref[...], w1_ref[...], preferred_element_type=jnp.float32)
        + b1_ref[...]
    )

    # Hoist loop-invariant VMEM loads out of the recurrence.
    # TODO(synk): latch w2 into the MXU weight registers once via
    # pltpu.matmul_push_rhs / matmul_acc_lhs / matmul_pop to avoid re-pushing the
    # RHS each step; kept jnp.dot since the raw MXU primitives need tile-granular
    # LHS shapes and add lowering risk for this M=1 matvec.
    w2 = w2_ref[...]          # already has -THRESHOLD folded into its diagonal
    b2 = b2_ref[...]

    one = jnp.float32(1.0)
    zero = jnp.float32(0.0)
    thr = jnp.float32(THRESHOLD)

    def group(g, mem_prev):                                # mem_prev: (1, 128)
        base = g * U
        row0 = pl.multiple_of(base, U)                     # sublane-aligned store start
        spk1_rows, spk2_rows, mem2_rows = [], [], []
        mem = mem_prev
        for u in range(U):                                 # unrolled at trace time
            cur1 = cur1_ref[pl.ds(base + u, 1), :]

            # Leaky neuron 1 (reset-by-subtraction); select instead of cast*mul.
            mem1 = BETA * mem + cur1 - jnp.where(mem > thr, thr, zero)
            spk1 = jnp.where(mem1 > thr, one, zero)

            # fc2 with neuron-2's reset (reset2 == spk1, thr == 1.0) pre-folded
            # into w2's diagonal, so no explicit "- spk1 * thr" is needed.
            cur2 = jnp.dot(spk1, w2, preferred_element_type=jnp.float32) + b2
            mem2 = BETA * mem1 + cur2
            spk2 = jnp.where(mem2 > thr, one, zero)

            spk1_rows.append(spk1)
            spk2_rows.append(spk2)
            mem2_rows.append(mem2)
            mem = mem2                                     # mem0 of the next step

        # One full, unmasked (8,128) tile store per quantity per group.
        spk1_ref[pl.ds(row0, U), :] = jnp.concatenate(spk1_rows, axis=0)
        spk2_ref[pl.ds(row0, U), :] = jnp.concatenate(spk2_rows, axis=0)
        mem2_ref[pl.ds(row0, U), :] = jnp.concatenate(mem2_rows, axis=0)
        return mem

    lax.fori_loop(0, Tp // U, group, mem0_ref[...])


def _round_up(n, m):
    return ((n + m - 1) // m) * m


@jax.jit
def actor_rollout(xs, mem0, w1, b1, w2, b2):
    """Run T timesteps of Actor.forward in one fused Pallas kernel.

    Args:
      xs:   (T, input_dims) one observation per timestep.
      mem0: (h,) initial membrane (Actor.init_membranes()).
      w1:   (input_dims, h) fc1 weight stored transposed as (in, out).
      b1:   (h,)
      w2:   (h, a) fc2 weight stored transposed, a = n_actions * NUM_NEURONS_PER_ACTION.
      b2:   (a,)
    Returns:
      spk1_hist (T, h), spk2_hist (T, a), mem2_hist (T, a).
    """
    T, d_in = xs.shape
    h = w1.shape[1]
    a = w2.shape[1]
    # forward() feeds mem1 (fc1 width) into neuron2 (fc2 width): the reuse is only
    # well defined when the widths agree.
    assert h == a, f"hidden width ({h}) must equal output width ({a})"

    pin = _round_up(d_in, 128)
    pn = _round_up(h, 128)
    Tp = _round_up(T, _UNROLL)

    f32 = jnp.float32
    # Zero-pad feature dims to full 128-lane vregs and T to a multiple of the
    # unroll factor. Exact: padded lanes stay 0 through the whole recurrence and
    # padded (trailing) timesteps never influence earlier outputs.
    xs_p = jnp.pad(xs.astype(f32), ((0, Tp - T), (0, pin - d_in)))
    w1_p = jnp.pad(w1.astype(f32), ((0, pin - d_in), (0, pn - h)))
    b1_p = jnp.pad(b1.astype(f32), (0, pn - h)).reshape(1, pn)
    # Fold neuron-2's reset-by-subtraction into fc2: since reset2 == spk1 and
    # spk1 ∈ {0,1}, spk1 @ (w2 - thr*I) == spk1 @ w2 - thr*spk1.
    w2_eff = w2.astype(f32) - jnp.float32(THRESHOLD) * jnp.eye(h, dtype=f32)
    w2_p = jnp.pad(w2_eff, ((0, pn - h), (0, pn - a)))
    b2_p = jnp.pad(b2.astype(f32), (0, pn - a)).reshape(1, pn)
    mem0_p = jnp.pad(mem0.astype(f32), (0, pn - h)).reshape(1, pn)

    vmem = pltpu.MemorySpace.VMEM
    spk1_o, spk2_o, mem2_o = pl.pallas_call(
        _actor_rollout_kernel,
        out_shape=(
            jax.ShapeDtypeStruct((Tp, pn), f32),
            jax.ShapeDtypeStruct((Tp, pn), f32),
            jax.ShapeDtypeStruct((Tp, pn), f32),
        ),
        in_specs=[pl.BlockSpec(memory_space=vmem)] * 6,   # whole arrays, VMEM-resident
        out_specs=(
            pl.BlockSpec(memory_space=vmem),
            pl.BlockSpec(memory_space=vmem),
            pl.BlockSpec(memory_space=vmem),
        ),
        scratch_shapes=[pltpu.VMEM((Tp, pn), f32)],       # cur1 for all timesteps
    )(xs_p, w1_p, b1_p, w2_p, b2_p, mem0_p)

    return spk1_o[:T, :h], spk2_o[:T, :a], mem2_o[:T, :a]


def actor_forward(x, mem0, w1, b1, w2, b2):
    """Single-step forward matching Actor.forward(x, mem0, t): returns (spk1, spk2, mem2)."""
    spk1, spk2, mem2 = actor_rollout(x.reshape(1, -1), mem0, w1, b1, w2, b2)
    return spk1[0], spk2[0], mem2[0]


if __name__ == "__main__":
    key = jax.random.PRNGKey(0)

    input_dims = 16
    n_actions = 4
    out_dim = n_actions * NUM_NEURONS_PER_ACTION          # 40
    # TODO(synk): the original hardcodes fc1 width 256, yet forward() feeds mem1
    # (fc1-width) into neuron2 (fc2-width = n_actions*10); that reuse is only
    # shape-consistent when the widths match, so hidden == out_dim here.
    hidden = out_dim                                       # 40
    T = TIMESTEPS                                          # 100

    k1, k2, k3, k4, k5 = jax.random.split(key, 5)
    # Deterministic nn.Linear-style init: U(-1/sqrt(fan_in), 1/sqrt(fan_in)).
    lim1 = 1.0 / jnp.sqrt(jnp.float32(input_dims))
    w1 = jax.random.uniform(k1, (input_dims, hidden), jnp.float32, -lim1, lim1)
    b1 = jax.random.uniform(k2, (hidden,), jnp.float32, -lim1, lim1)
    lim2 = 1.0 / jnp.sqrt(jnp.float32(hidden))
    w2 = jax.random.uniform(k3, (hidden, out_dim), jnp.float32, -lim2, lim2)
    b2 = jax.random.uniform(k4, (out_dim,), jnp.float32, -lim2, lim2)

    xs = jax.random.normal(k5, (T, input_dims), jnp.float32)   # one obs per timestep
    mem0 = jnp.zeros((hidden,), jnp.float32)                   # Actor.init_membranes()

    # Fused 100-step rollout in a single pallas_call.
    spk1_hist, spk2_hist, mem2_hist = actor_rollout(xs, mem0, w1, b1, w2, b2)
    jax.block_until_ready((spk1_hist, spk2_hist, mem2_hist))

    # Internal-consistency check: the fused rollout must reproduce T sequential
    # single-step kernel calls (the per-call structure of the original module,
    # feeding mem2 back as the next mem0 — the only state forward() exposes).
    mem = mem0
    spk1_steps, spk2_steps, mem2_steps = [], [], []
    for t in range(T):
        s1, s2, m2 = actor_forward(xs[t], mem, w1, b1, w2, b2)
        spk1_steps.append(s1)
        spk2_steps.append(s2)
        mem2_steps.append(m2)
        mem = m2
    spk1_seq = jnp.stack(spk1_steps)
    spk2_seq = jnp.stack(spk2_steps)
    mem2_seq = jnp.stack(mem2_steps)
    assert jnp.allclose(spk1_hist, spk1_seq, atol=1e-6), "spk1 history mismatch"
    assert jnp.allclose(spk2_hist, spk2_seq, atol=1e-6), "spk2 history mismatch"
    assert jnp.allclose(mem2_hist, mem2_seq, atol=1e-5), "mem2 history mismatch"

    # Module-style history buffers (side-effect state), filled with glue JAX:
    #   self.neuron1_history[0, :, t] = spk1 ; self.neuron2_history[1, :, t] = spk2
    neuron1_history = jnp.zeros((2, hidden, T), jnp.float32).at[0].set(spk1_hist.T)
    neuron2_history = jnp.zeros((2, out_dim, T), jnp.float32).at[1].set(spk2_hist.T)

    spk2, mem2 = spk2_hist[-1], mem2_hist[-1]              # last forward()'s return
    assert spk2.shape == (out_dim,) and mem2.shape == (out_dim,)
    jax.block_until_ready((neuron1_history, neuron2_history))
    print("KERNEL_OK")
</pallas_src>

<mosaic_0001>
module attributes {stable_mosaic.version = 11 : i64} {
  func.func @_actor_rollout_kernel(%arg0: memref<104x128xf32, #tpu.memory_space<vmem>>, %arg1: memref<128x128xf32, #tpu.memory_space<vmem>>, %arg2: memref<1x128xf32, #tpu.memory_space<vmem>>, %arg3: memref<128x128xf32, #tpu.memory_space<vmem>>, %arg4: memref<1x128xf32, #tpu.memory_space<vmem>>, %arg5: memref<1x128xf32, #tpu.memory_space<vmem>>, %arg6: memref<104x128xf32, #tpu.memory_space<vmem>>, %arg7: memref<104x128xf32, #tpu.memory_space<vmem>>, %arg8: memref<104x128xf32, #tpu.memory_space<vmem>>, %arg9: memref<104x128xf32, #tpu.memory_space<vmem>>) attributes {dimension_semantics = [], scalar_prefetch = 0 : i64, scratch_operands = 1 : i64, tpu.core_type = #tpu.core_type<tc>} {
    %c0 = arith.constant 0 : index
    %c0_0 = arith.constant 0 : index
    %0 = vector.load %arg0[%c0, %c0_0] : memref<104x128xf32, #tpu.memory_space<vmem>>, vector<104x128xf32>
    %c0_1 = arith.constant 0 : index
    %c0_2 = arith.constant 0 : index
    %1 = vector.load %arg1[%c0_1, %c0_2] : memref<128x128xf32, #tpu.memory_space<vmem>>, vector<128x128xf32>
    %cst = arith.constant dense<0.000000e+00> : vector<104x128xf32>
    %2 = tpu.matmul %0, %1, %cst {dimension_numbers = #tpu.dot_dimension_numbers<[1], [0], [0], [1], [0, 0, 1, 1], [], []>} : vector<104x128xf32>, vector<128x128xf32>, vector<104x128xf32> -> vector<104x128xf32>
    %c0_3 = arith.constant 0 : index
    %c0_4 = arith.constant 0 : index
    %3 = vector.load %arg2[%c0_3, %c0_4] : memref<1x128xf32, #tpu.memory_space<vmem>>, vector<1x128xf32>
    %4 = vector.broadcast %3 : vector<1x128xf32> to vector<104x128xf32>
    %5 = arith.addf %2, %4 : vector<104x128xf32>
    %c0_5 = arith.constant 0 : index
    %c0_6 = arith.constant 0 : index
    %6 = vector.load %arg9[%c0_5, %c0_6] : memref<104x128xf32, #tpu.memory_space<vmem>>, vector<104x128xf32>
    tpu.vector_store %arg9[%c0_5, %c0_6], %5 {strides = array<i32>} : memref<104x128xf32, #tpu.memory_space<vmem>>, vector<104x128xf32>,
    %c0_7 = arith.constant 0 : index
    %c0_8 = arith.constant 0 : index
    %7 = vector.load %arg3[%c0_7, %c0_8] : memref<128x128xf32, #tpu.memory_space<vmem>>, vector<128x128xf32>
    %c0_9 = arith.constant 0 : index
    %c0_10 = arith.constant 0 : index
    %8 = vector.load %arg4[%c0_9, %c0_10] : memref<1x128xf32, #tpu.memory_space<vmem>>, vector<1x128xf32>
    %c0_11 = arith.constant 0 : index
    %c0_12 = arith.constant 0 : index
    %9 = vector.load %arg5[%c0_11, %c0_12] : memref<1x128xf32, #tpu.memory_space<vmem>>, vector<1x128xf32>
    %cst_13 = arith.constant 1.000000e+00 : f32
    %cst_14 = arith.constant 0.000000e+00 : f32
    %cst_15 = arith.constant 1.000000e+00 : f32
    %c0_i32 = arith.constant 0 : i32
    %c13_i32 = arith.constant 13 : i32
    %10 = arith.addi %c0_i32, %c13_i32 : i32
    %c1_i32 = arith.constant 1 : i32
    %11 = scf.for %arg10 = %c0_i32 to %10 step %c1_i32 iter_args(%arg11 = %9) -> (vector<1x128xf32>)  : i32 {
      %c8_i32 = arith.constant 8 : i32
      %12 = arith.muli %arg10, %c8_i32 : i32
      %13 = tpu.assume_multiple %12, 8 : i32
      %c0_i32_17 = arith.constant 0 : i32
      %14 = arith.addi %12, %c0_i32_17 : i32
      %15 = arith.index_cast %14 : i32 to index
      %c0_18 = arith.constant 0 : index
      %16 = vector.load %arg9[%15, %c0_18] : memref<104x128xf32, #tpu.memory_space<vmem>>, vector<1x128xf32>
      %cst_19 = arith.constant 0.949999988 : f32
      %17 = vector.broadcast %cst_19 : f32 to vector<1x128xf32>
      %18 = arith.mulf %17, %arg11 : vector<1x128xf32>
      %19 = arith.addf %18, %16 : vector<1x128xf32>
      %20 = vector.broadcast %cst_13 : f32 to vector<1x128xf32>
      %21 = arith.cmpf ogt, %arg11, %20 : vector<1x128xf32>
      %22 = vector.broadcast %cst_13 : f32 to vector<1x128xf32>
      %23 = vector.broadcast %cst_14 : f32 to vector<1x128xf32>
      %24 = arith.select %21, %22, %23 : vector<1x128xi1>, vector<1x128xf32>
      %25 = arith.subf %19, %24 : vector<1x128xf32>
      %26 = vector.broadcast %cst_13 : f32 to vector<1x128xf32>
      %27 = arith.cmpf ogt, %25, %26 : vector<1x128xf32>
      %28 = vector.broadcast %cst_15 : f32 to vector<1x128xf32>
      %29 = vector.broadcast %cst_14 : f32 to vector<1x128xf32>
      %30 = arith.select %27, %28, %29 : vector<1x128xi1>, vector<1x128xf32>
      %cst_20 = arith.constant dense<0.000000e+00> : vector<1x128xf32>
      %31 = tpu.matmul %30, %7, %cst_20 {dimension_numbers = #tpu.dot_dimension_numbers<[1], [0], [0], [1], [0, 0, 1, 1], [], []>} : vector<1x128xf32>, vector<128x128xf32>, vector<1x128xf32> -> vector<1x128xf32>
      %32 = arith.addf %31, %8 : vector<1x128xf32>
      %cst_21 = arith.constant 0.949999988 : f32
      %33 = vector.broadcast %cst_21 : f32 to vector<1x128xf32>
      %34 = arith.mulf %33, %25 : vector<1x128xf32>
      %35 = arith.addf %34, %32 : vector<1x128xf32>
      %36 = vector.broadcast %cst_13 : f32 to vector<1x128xf32>
      %37 = arith.cmpf ogt, %35, %36 : vector<1x128xf32>
      %38 = vector.broadcast %cst_15 : f32 to vector<1x128xf32>
      %39 = vector.broadcast %cst_14 : f32 to vector<1x128xf32>
      %40 = arith.select %37, %38, %39 : vector<1x128xi1>, vector<1x128xf32>
      %c1_i32_22 = arith.constant 1 : i32
      %41 = arith.addi %12, %c1_i32_22 : i32
      %42 = arith.index_cast %41 : i32 to index
      %c0_23 = arith.constant 0 : index
      %43 = vector.load %arg9[%42, %c0_23] : memref<104x128xf32, #tpu.memory_space<vmem>>, vector<1x128xf32>
      %cst_24 = arith.constant 0.949999988 : f32
      %44 = vector.broadcast %cst_24 : f32 to vector<1x128xf32>
      %45 = arith.mulf %44, %35 : vector<1x128xf32>
      %46 = arith.addf %45, %43 : vector<1x128xf32>
      %47 = vector.broadcast %cst_13 : f32 to vector<1x128xf32>
      %48 = arith.cmpf ogt, %35, %47 : vector<1x128xf32>
      %49 = vector.broadcast %cst_13 : f32 to vector<1x128xf32>
      %50 = vector.broadcast %cst_14 : f32 to vector<1x128xf32>
      %51 = arith.select %48, %49, %50 : vector<1x128xi1>, vector<1x128xf32>
      %52 = arith.subf %46, %51 : vector<1x128xf32>
      %53 = vector.broadcast %cst_13 : f32 to vector<1x128xf32>
      %54 = arith.cmpf ogt, %52, %53 : vector<1x128xf32>
      %55 = vector.broadcast %cst_15 : f32 to vector<1x128xf32>
      %56 = vector.broadcast %cst_14 : f32 to vector<1x128xf32>
      %57 = arith.select %54, %55, %56 : vector<1x128xi1>, vector<1x128xf32>
      %cst_25 = arith.constant dense<0.000000e+00> : vector<1x128xf32>
      %58 = tpu.matmul %57, %7, %cst_25 {dimension_numbers = #tpu.dot_dimension_numbers<[1], [0], [0], [1], [0, 0, 1, 1], [], []>} : vector<1x128xf32>, vector<128x128xf32>, vector<1x128xf32> -> vector<1x128xf32>
      %59 = arith.addf %58, %8 : vector<1x128xf32>
      %cst_26 = arith.constant 0.949999988 : f32
      %60 = vector.broadcast %cst_26 : f32 to vector<1x128xf32>
      %61 = arith.mulf %60, %52 : vector<1x128xf32>
      %62 = arith.addf %61, %59 : vector<1x128xf32>
      %63 = vector.broadcast %cst_13 : f32 to vector<1x128xf32>
      %64 = arith.cmpf ogt, %62, %63 : vector<1x128xf32>
      %65 = vector.broadcast %cst_15 : f32 to vector<1x128xf32>
      %66 = vector.broadcast %cst_14 : f32 to vector<1x128xf32>
      %67 = arith.select %64, %65, %66 : vector<1x128xi1>, vector<1x128xf32>
      %c2_i32 = arith.constant 2 : i32
      %68 = arith.addi %12, %c2_i32 : i32
      %69 = arith.index_cast %68 : i32 to index
      %c0_27 = arith.constant 0 : index
      %70 = vector.load %arg9[%69, %c0_27] : memref<104x128xf32, #tpu.memory_space<vmem>>, vector<1x128xf32>
      %cst_28 = arith.constant 0.949999988 : f32
      %71 = vector.broadcast %cst_28 : f32 to vector<1x128xf32>
      %72 = arith.mulf %71, %62 : vector<1x128xf32>
      %73 = arith.addf %72, %70 : vector<1x128xf32>
      %74 = vector.broadcast %cst_13 : f32 to vector<1x128xf32>
      %75 = arith.cmpf ogt, %62, %74 : vector<1x128xf32>
      %76 = vector.broadcast %cst_13 : f32 to vector<1x128xf32>
      %77 = vector.broadcast %cst_14 : f32 to vector<1x128xf32>
      %78 = arith.select %75, %76, %77 : vector<1x128xi1>, vector<1x128xf32>
      %79 = arith.subf %73, %78 : vector<1x128xf32>
      %80 = vector.broadcast %cst_13 : f32 to vector<1x128xf32>
      %81 = arith.cmpf ogt, %79, %80 : vector<1x128xf32>
      %82 = vector.broadcast %cst_15 : f32 to vector<1x128xf32>
      %83 = vector.broadcast %cst_14 : f32 to vector<1x128xf32>
      %84 = arith.select %81, %82, %83 : vector<1x128xi1>, vector<1x128xf32>
      %cst_29 = arith.constant dense<0.000000e+00> : vector<1x128xf32>
      %85 = tpu.matmul %84, %7, %cst_29 {dimension_numbers = #tpu.dot_dimension_numbers<[1], [0], [0], [1], [0, 0, 1, 1], [], []>} : vector<1x128xf32>, vector<128x128xf32>, vector<1x128xf32> -> vector<1x128xf32>
      %86 = arith.addf %85, %8 : vector<1x128xf32>
      %cst_30 = arith.constant 0.949999988 : f32
      %87 = vector.broadcast %cst_30 : f32 to vector<1x128xf32>
      %88 = arith.mulf %87, %79 : vector<1x128xf32>
      %89 = arith.addf %88, %86 : vector<1x128xf32>
      %90 = vector.broadcast %cst_13 : f32 to vector<1x128xf32>
      %91 = arith.cmpf ogt, %89, %90 : vector<1x128xf32>
      %92 = vector.broadcast %cst_15 : f32 to vector<1x128xf32>
      %93 = vector.broadcast %cst_14 : f32 to vector<1x128xf32>
      %94 = arith.select %91, %92, %93 : vector<1x128xi1>, vector<1x128xf32>
      %c3_i32 = arith.constant 3 : i32
      %95 = arith.addi %12, %c3_i32 : i32
      %96 = arith.index_cast %95 : i32 to index
      %c0_31 = arith.constant 0 : index
      %97 = vector.load %arg9[%96, %c0_31] : memref<104x128xf32, #tpu.memory_space<vmem>>, vector<1x128xf32>
      %cst_32 = arith.constant 0.949999988 : f32
      %98 = vector.broadcast %cst_32 : f32 to vector<1x128xf32>
      %99 = arith.mulf %98, %89 : vector<1x128xf32>
      %100 = arith.addf %99, %97 : vector<1x128xf32>
      %101 = vector.broadcast %cst_13 : f32 to vector<1x128xf32>
      %102 = arith.cmpf ogt, %89, %101 : vector<1x128xf32>
      %103 = vector.broadcast %cst_13 : f32 to vector<1x128xf32>
      %104 = vector.broadcast %cst_14 : f32 to vector<1x128xf32>
      %105 = arith.select %102, %103, %104 : vector<1x128xi1>, vector<1x128xf32>
      %106 = arith.subf %100, %105 : vector<1x128xf32>
      %107 = vector.broadcast %cst_13 : f32 to vector<1x128xf32>
      %108 = arith.cmpf ogt, %106, %107 : vector<1x128xf32>
      %109 = vector.broadcast %cst_15 : f32 to vector<1x128xf32>
      %110 = vector.broadcast %cst_14 : f32 to vector<1x128xf32>
      %111 = arith.select %108, %109, %110 : vector<1x128xi1>, vector<1x128xf32>
      %cst_33 = arith.constant dense<0.000000e+00> : vector<1x128xf32>
      %112 = tpu.matmul %111, %7, %cst_33 {dimension_numbers = #tpu.dot_dimension_numbers<[1], [0], [0], [1], [0, 0, 1, 1], [], []>} : vector<1x128xf32>, vector<128x128xf32>, vector<1x128xf32> -> vector<1x128xf32>
      %113 = arith.addf %112, %8 : vector<1x128xf32>
      %cst_34 = arith.constant 0.949999988 : f32
      %114 = vector.broadcast %cst_34 : f32 to vector<1x128xf32>
      %115 = arith.mulf %114, %106 : vector<1x128xf32>
      %116 = arith.addf %115, %113 : vector<1x128xf32>
      %117 = vector.broadcast %cst_13 : f32 to vector<1x128xf32>
      %118 = arith.cmpf ogt, %116, %117 : vector<1x128xf32>
      %119 = vector.broadcast %cst_15 : f32 to vector<1x128xf32>
      %120 = vector.broadcast %cst_14 : f32 to vector<1x128xf32>
      %121 = arith.select %118, %119, %120 : vector<1x128xi1>, vector<1x128xf32>
      %c4_i32 = arith.constant 4 : i32
      %122 = arith.addi %12, %c4_i32 : i32
      %123 = arith.index_cast %122 : i32 to index
      %c0_35 = arith.constant 0 : index
      %124 = vector.load %arg9[%123, %c0_35] : memref<104x128xf32, #tpu.memory_space<vmem>>, vector<1x128xf32>
      %cst_36 = arith.constant 0.949999988 : f32
      %125 = vector.broadcast %cst_36 : f32 to vector<1x128xf32>
      %126 = arith.mulf %125, %116 : vector<1x128xf32>
      %127 = arith.addf %126, %124 : vector<1x128xf32>
      %128 = vector.broadcast %cst_13 : f32 to vector<1x128xf32>
      %129 = arith.cmpf ogt, %116, %128 : vector<1x128xf32>
      %130 = vector.broadcast %cst_13 : f32 to vector<1x128xf32>
      %131 = vector.broadcast %cst_14 : f32 to vector<1x128xf32>
      %132 = arith.select %129, %130, %131 : vector<1x128xi1>, vector<1x128xf32>
      %133 = arith.subf %127, %132 : vector<1x128xf32>
      %134 = vector.broadcast %cst_13 : f32 to vector<1x128xf32>
      %135 = arith.cmpf ogt, %133, %134 : vector<1x128xf32>
      %136 = vector.broadcast %cst_15 : f32 to vector<1x128xf32>
      %137 = vector.broadcast %cst_14 : f32 to vector<1x128xf32>
      %138 = arith.select %135, %136, %137 : vector<1x128xi1>, vector<1x128xf32>
      %cst_37 = arith.constant dense<0.000000e+00> : vector<1x128xf32>
      %139 = tpu.matmul %138, %7, %cst_37 {dimension_numbers = #tpu.dot_dimension_numbers<[1], [0], [0], [1], [0, 0, 1, 1], [], []>} : vector<1x128xf32>, vector<128x128xf32>, vector<1x128xf32> -> vector<1x128xf32>
      %140 = arith.addf %139, %8 : vector<1x128xf32>
      %cst_38 = arith.constant 0.949999988 : f32
      %141 = vector.broadcast %cst_38 : f32 to vector<1x128xf32>
      %142 = arith.mulf %141, %133 : vector<1x128xf32>
      %143 = arith.addf %142, %140 : vector<1x128xf32>
      %144 = vector.broadcast %cst_13 : f32 to vector<1x128xf32>
      %145 = arith.cmpf ogt, %143, %144 : vector<1x128xf32>
      %146 = vector.broadcast %cst_15 : f32 to vector<1x128xf32>
      %147 = vector.broadcast %cst_14 : f32 to vector<1x128xf32>
      %148 = arith.select %145, %146, %147 : vector<1x128xi1>, vector<1x128xf32>
      %c5_i32 = arith.constant 5 : i32
      %149 = arith.addi %12, %c5_i32 : i32
      %150 = arith.index_cast %149 : i32 to index
      %c0_39 = arith.constant 0 : index
      %151 = vector.load %arg9[%150, %c0_39] : memref<104x128xf32, #tpu.memory_space<vmem>>, vector<1x128xf32>
      %cst_40 = arith.constant 0.949999988 : f32
      %152 = vector.broadcast %cst_40 : f32 to vector<1x128xf32>
      %153 = arith.mulf %152, %143 : vector<1x128xf32>
      %154 = arith.addf %153, %151 : vector<1x128xf32>
      %155 = vector.broadcast %cst_13 : f32 to vector<1x128xf32>
      %156 = arith.cmpf ogt, %143, %155 : vector<1x128xf32>
      %157 = vector.broadcast %cst_13 : f32 to vector<1x128xf32>
      %158 = vector.broadcast %cst_14 : f32 to vector<1x128xf32>
      %159 = arith.select %156, %157, %158 : vector<1x128xi1>, vector<1x128xf32>
      %160 = arith.subf %154, %159 : vector<1x128xf32>
      %161 = vector.broadcast %cst_13 : f32 to vector<1x128xf32>
      %162 = arith.cmpf ogt, %160, %161 : vector<1x128xf32>
      %163 = vector.broadcast %cst_15 : f32 to vector<1x128xf32>
      %164 = vector.broadcast %cst_14 : f32 to vector<1x128xf32>
      %165 = arith.select %162, %163, %164 : vector<1x128xi1>, vector<1x128xf32>
      %cst_41 = arith.constant dense<0.000000e+00> : vector<1x128xf32>
      %166 = tpu.matmul %165, %7, %cst_41 {dimension_numbers = #tpu.dot_dimension_numbers<[1], [0], [0], [1], [0, 0, 1, 1], [], []>} : vector<1x128xf32>, vector<128x128xf32>, vector<1x128xf32> -> vector<1x128xf32>
      %167 = arith.addf %166, %8 : vector<1x128xf32>
      %cst_42 = arith.constant 0.949999988 : f32
      %168 = vector.broadcast %cst_42 : f32 to vector<1x128xf32>
      %169 = arith.mulf %168, %160 : vector<1x128xf32>
      %170 = arith.addf %169, %167 : vector<1x128xf32>
      %171 = vector.broadcast %cst_13 : f32 to vector<1x128xf32>
      %172 = arith.cmpf ogt, %170, %171 : vector<1x128xf32>
      %173 = vector.broadcast %cst_15 : f32 to vector<1x128xf32>
      %174 = vector.broadcast %cst_14 : f32 to vector<1x128xf32>
      %175 = arith.select %172, %173, %174 : vector<1x128xi1>, vector<1x128xf32>
      %c6_i32 = arith.constant 6 : i32
      %176 = arith.addi %12, %c6_i32 : i32
      %177 = arith.index_cast %176 : i32 to index
      %c0_43 = arith.constant 0 : index
      %178 = vector.load %arg9[%177, %c0_43] : memref<104x128xf32, #tpu.memory_space<vmem>>, vector<1x128xf32>
      %cst_44 = arith.constant 0.949999988 : f32
      %179 = vector.broadcast %cst_44 : f32 to vector<1x128xf32>
      %180 = arith.mulf %179, %170 : vector<1x128xf32>
      %181 = arith.addf %180, %178 : vector<1x128xf32>
      %182 = vector.broadcast %cst_13 : f32 to vector<1x128xf32>
      %183 = arith.cmpf ogt, %170, %182 : vector<1x128xf32>
      %184 = vector.broadcast %cst_13 : f32 to vector<1x128xf32>
      %185 = vector.broadcast %cst_14 : f32 to vector<1x128xf32>
      %186 = arith.select %183, %184, %185 : vector<1x128xi1>, vector<1x128xf32>
      %187 = arith.subf %181, %186 : vector<1x128xf32>
      %188 = vector.broadcast %cst_13 : f32 to vector<1x128xf32>
      %189 = arith.cmpf ogt, %187, %188 : vector<1x128xf32>
      %190 = vector.broadcast %cst_15 : f32 to vector<1x128xf32>
      %191 = vector.broadcast %cst_14 : f32 to vector<1x128xf32>
      %192 = arith.select %189, %190, %191 : vector<1x128xi1>, vector<1x128xf32>
      %cst_45 = arith.constant dense<0.000000e+00> : vector<1x128xf32>
      %193 = tpu.matmul %192, %7, %cst_45 {dimension_numbers = #tpu.dot_dimension_numbers<[1], [0], [0], [1], [0, 0, 1, 1], [], []>} : vector<1x128xf32>, vector<128x128xf32>, vector<1x128xf32> -> vector<1x128xf32>
      %194 = arith.addf %193, %8 : vector<1x128xf32>
      %cst_46 = arith.constant 0.949999988 : f32
      %195 = vector.broadcast %cst_46 : f32 to vector<1x128xf32>
      %196 = arith.mulf %195, %187 : vector<1x128xf32>
      %197 = arith.addf %196, %194 : vector<1x128xf32>
      %198 = vector.broadcast %cst_13 : f32 to vector<1x128xf32>
      %199 = arith.cmpf ogt, %197, %198 : vector<1x128xf32>
      %200 = vector.broadcast %cst_15 : f32 to vector<1x128xf32>
      %201 = vector.broadcast %cst_14 : f32 to vector<1x128xf32>
      %202 = arith.select %199, %200, %201 : vector<1x128xi1>, vector<1x128xf32>
      %c7_i32 = arith.constant 7 : i32
      %203 = arith.addi %12, %c7_i32 : i32
      %204 = arith.index_cast %203 : i32 to index
      %c0_47 = arith.constant 0 : index
      %205 = vector.load %arg9[%204, %c0_47] : memref<104x128xf32, #tpu.memory_space<vmem>>, vector<1x128xf32>
      %cst_48 = arith.constant 0.949999988 : f32
      %206 = vector.broadcast %cst_48 : f32 to vector<1x128xf32>
      %207 = arith.mulf %206, %197 : vector<1x128xf32>
      %208 = arith.addf %207, %205 : vector<1x128xf32>
      %209 = vector.broadcast %cst_13 : f32 to vector<1x128xf32>
      %210 = arith.cmpf ogt, %197, %209 : vector<1x128xf32>
      %211 = vector.broadcast %cst_13 : f32 to vector<1x128xf32>
      %212 = vector.broadcast %cst_14 : f32 to vector<1x128xf32>
      %213 = arith.select %210, %211, %212 : vector<1x128xi1>, vector<1x128xf32>
      %214 = arith.subf %208, %213 : vector<1x128xf32>
      %215 = vector.broadcast %cst_13 : f32 to vector<1x128xf32>
      %216 = arith.cmpf ogt, %214, %215 : vector<1x128xf32>
      %217 = vector.broadcast %cst_15 : f32 to vector<1x128xf32>
      %218 = vector.broadcast %cst_14 : f32 to vector<1x128xf32>
      %219 = arith.select %216, %217, %218 : vector<1x128xi1>, vector<1x128xf32>
      %cst_49 = arith.constant dense<0.000000e+00> : vector<1x128xf32>
      %220 = tpu.matmul %219, %7, %cst_49 {dimension_numbers = #tpu.dot_dimension_numbers<[1], [0], [0], [1], [0, 0, 1, 1], [], []>} : vector<1x128xf32>, vector<128x128xf32>, vector<1x128xf32> -> vector<1x128xf32>
      %221 = arith.addf %220, %8 : vector<1x128xf32>
      %cst_50 = arith.constant 0.949999988 : f32
      %222 = vector.broadcast %cst_50 : f32 to vector<1x128xf32>
      %223 = arith.mulf %222, %214 : vector<1x128xf32>
      %224 = arith.addf %223, %221 : vector<1x128xf32>
      %225 = vector.broadcast %cst_13 : f32 to vector<1x128xf32>
      %226 = arith.cmpf ogt, %224, %225 : vector<1x128xf32>
      %227 = vector.broadcast %cst_15 : f32 to vector<1x128xf32>
      %228 = vector.broadcast %cst_14 : f32 to vector<1x128xf32>
      %229 = arith.select %226, %227, %228 : vector<1x128xi1>, vector<1x128xf32>
      %230 = tpu.concatenate %30, %57, %84, %111, %138, %165, %192, %219 in 0 : vector<1x128xf32>, vector<1x128xf32>, vector<1x128xf32>, vector<1x128xf32>, vector<1x128xf32>, vector<1x128xf32>, vector<1x128xf32>, vector<1x128xf32> -> vector<8x128xf32>
      %231 = arith.index_cast %13 : i32 to index
      %c0_51 = arith.constant 0 : index
      %232 = vector.load %arg6[%231, %c0_51] : memref<104x128xf32, #tpu.memory_space<vmem>>, vector<8x128xf32>
      tpu.vector_store %arg6[%231, %c0_51], %230 {strides = array<i32>} : memref<104x128xf32, #tpu.memory_space<vmem>>, vector<8x128xf32>,
      %233 = tpu.concatenate %40, %67, %94, %121, %148, %175, %202, %229 in 0 : vector<1x128xf32>, vector<1x128xf32>, vector<1x128xf32>, vector<1x128xf32>, vector<1x128xf32>, vector<1x128xf32>, vector<1x128xf32>, vector<1x128xf32> -> vector<8x128xf32>
      %234 = arith.index_cast %13 : i32 to index
      %c0_52 = arith.constant 0 : index
      %235 = vector.load %arg7[%234, %c0_52] : memref<104x128xf32, #tpu.memory_space<vmem>>, vector<8x128xf32>
      tpu.vector_store %arg7[%234, %c0_52], %233 {strides = array<i32>} : memref<104x128xf32, #tpu.memory_space<vmem>>, vector<8x128xf32>,
      %236 = tpu.concatenate %35, %62, %89, %116, %143, %170, %197, %224 in 0 : vector<1x128xf32>, vector<1x128xf32>, vector<1x128xf32>, vector<1x128xf32>, vector<1x128xf32>, vector<1x128xf32>, vector<1x128xf32>, vector<1x128xf32> -> vector<8x128xf32>
      %237 = arith.index_cast %13 : i32 to index
      %c0_53 = arith.constant 0 : index
      %238 = vector.load %arg8[%237, %c0_53] : memref<104x128xf32, #tpu.memory_space<vmem>>, vector<8x128xf32>
      tpu.vector_store %arg8[%237, %c0_53], %236 {strides = array<i32>} : memref<104x128xf32, #tpu.memory_space<vmem>>, vector<8x128xf32>,
      scf.yield %224 : vector<1x128xf32>
    }
    %c13_i32_16 = arith.constant 13 : i32
    return
  }
}

</mosaic_0001>

<llo_original>
// kernel: actor_rollout.1
$region0: #{actor_rollout.1}
  #allocation0 [shape = 'u32[]', space=smem, size = 0x4, offset = 0x4, fixed_abs, tag = 'smem constant byte address 0x4 - core index']
  #allocation1 [shape = 'u32[144,128]{1,0:T(1,128)}', space=vmem, size = 0x12000, scoped, tag = 'internal scratch']
  #allocation2 [shape = 'f32[104,128]{1,0:T(8,128)}', space=vmem, size = 0xd000, scoped, tag = 'scratch operand']
  %s0 = inlined_call_operand.vmem [shape: f32[104,128], index: 0, kind: input, shape index: {}]
  %s1 = inlined_call_operand.vmem [shape: f32[128,128], index: 1, kind: input, shape index: {}]
  %s2 = inlined_call_operand.vmem [shape: f32[1,128], index: 2, kind: input, shape index: {}]
  %s3 = inlined_call_operand.vmem [shape: f32[128,128], index: 3, kind: input, shape index: {}]
  %s4 = inlined_call_operand.vmem [shape: f32[1,128], index: 4, kind: input, shape index: {}]
  %s5 = inlined_call_operand.vmem [shape: f32[1,128], index: 5, kind: input, shape index: {}]
  %s6 = inlined_call_operand.vmem [shape: f32[104,128], index: 6, kind: output, shape index: {0}]
  %s7 = inlined_call_operand.vmem [shape: f32[104,128], index: 7, kind: output, shape index: {1}]
  %s8 = inlined_call_operand.vmem [shape: f32[104,128], index: 8, kind: output, shape index: {2}]
  %9 = xla_tuple %s6, %s7, %s8
  %s10 = sld [smem:[#allocation0]]
  $region57: #{actor_rollout.1} parent=0
    _
  %s12 = ssub.s32 1, %s10
  %s13 = scalar_select 0, %s12, %s10
  // Predicated region
  $region2: #{actor_rollout.1} parent=0 // pred_check
    _
  $region3: #{actor_rollout.1} parent=0 // pred_check_branch
    %15 = sbr.rel (0) target = $region5
  $region4: #{actor_rollout.1} parent=0 // pred_region
    _
  $region5: #{actor_rollout.1} parent=0 // pred_fallthru
    _
  // Predicated region
  $region6: #{actor_rollout.1} parent=0 // pred_check
    _
  $region7: #{actor_rollout.1} parent=0 // pred_check_branch
    %17 = sbr.rel (0) target = $region9
  $region8: #{actor_rollout.1} parent=0 // pred_region
    _
  $region9: #{actor_rollout.1} parent=0 // pred_fallthru
    _
  // Predicated region
  $region10: #{actor_rollout.1} parent=0 // pred_check
    _
  $region11: #{actor_rollout.1} parent=0 // pred_check_branch
    %19 = sbr.rel (0) target = $region13
  $region12: #{actor_rollout.1} parent=0 // pred_region
    _
  $region13: #{actor_rollout.1} parent=0 // pred_fallthru
    _
  // Predicated region
  $region14: #{actor_rollout.1} parent=0 // pred_check
    _
  $region15: #{actor_rollout.1} parent=0 // pred_check_branch
    %21 = sbr.rel (0) target = $region17
  $region16: #{actor_rollout.1} parent=0 // pred_region
    _
  $region17: #{actor_rollout.1} parent=0 // pred_fallthru
    _
  // Predicated region
  $region18: #{actor_rollout.1} parent=0 // pred_check
    _
  $region19: #{actor_rollout.1} parent=0 // pred_check_branch
    %23 = sbr.rel (0) target = $region21
  $region20: #{actor_rollout.1} parent=0 // pred_region
    _
  $region21: #{actor_rollout.1} parent=0 // pred_fallthru
    _
  // Predicated region
  $region22: #{actor_rollout.1} parent=0 // pred_check
    _
  $region23: #{actor_rollout.1} parent=0 // pred_check_branch
    %25 = sbr.rel (0) target = $region25
  $region24: #{actor_rollout.1} parent=0 // pred_region
    _
  $region25: #{actor_rollout.1} parent=0 // pred_fallthru
    _
  %v26 = vld [vmem:[%s0] sm:$0xff]
  %v27 = vld [vmem:[%s0 + $0x8] sm:$0xff]
  %v28 = vld [vmem:[%s0 + $0x10] sm:$0xff]
  %v29 = vld [vmem:[%s0 + $0x18] sm:$0xff]
  %v30 = vld [vmem:[%s0 + $0x20] sm:$0xff]
  %v31 = vld [vmem:[%s0 + $0x28] sm:$0xff]
  %v32 = vld [vmem:[%s0 + $0x30] sm:$0xff]
  %v33 = vld [vmem:[%s0 + $0x38] sm:$0xff]
  %v34 = vld [vmem:[%s0 + $0x40] sm:$0xff]
  %v35 = vld [vmem:[%s0 + $0x48] sm:$0xff]
  %v36 = vld [vmem:[%s0 + $0x50] sm:$0xff]
  %v37 = vld [vmem:[%s0 + $0x58] sm:$0xff]
  %v38 = vld [vmem:[%s0 + $0x60] sm:$0xff]
  %v39 = vld [vmem:[%s1] sm:$0xff]
  %v40 = vld [vmem:[%s1 + $0x8] sm:$0xff]
  %v41 = vld [vmem:[%s1 + $0x10] sm:$0xff]
  %v42 = vld [vmem:[%s1 + $0x18] sm:$0xff]
  %v43 = vld [vmem:[%s1 + $0x20] sm:$0xff]
  %v44 = vld [vmem:[%s1 + $0x28] sm:$0xff]
  %v45 = vld [vmem:[%s1 + $0x30] sm:$0xff]
  %v46 = vld [vmem:[%s1 + $0x38] sm:$0xff]
  %v47 = vld [vmem:[%s1 + $0x40] sm:$0xff]
  %v48 = vld [vmem:[%s1 + $0x48] sm:$0xff]
  %v49 = vld [vmem:[%s1 + $0x50] sm:$0xff]
  %v50 = vld [vmem:[%s1 + $0x58] sm:$0xff]
  %v51 = vld [vmem:[%s1 + $0x60] sm:$0xff]
  %v52 = vld [vmem:[%s1 + $0x68] sm:$0xff]
  %v53 = vld [vmem:[%s1 + $0x70] sm:$0xff]
  %v54 = vld [vmem:[%s1 + $0x78] sm:$0xff]
  %v55 = vld [vmem:[%s2] sm:$0x1]
  %v57 = vlaneseq
  %v58 = vshrl.u32 %v57, 7
  %v59 = vsub.s32 0, %v58
  %v60 = vrot.slane %v55, %v59
  %62 = vmatprep.subr.mxu0 0.0
  %63 = vmatpush1.msra.mxu0 %v39
  %64 = vmatprep.subr.mxu0 0.0
  %65 = vmatpush1.msra.mxu0 %v40
  %66 = vmatprep.subr.mxu0 0.0
  %67 = vmatpush1.msra.mxu0 %v41
  %68 = vmatprep.subr.mxu0 0.0
  %69 = vmatpush1.msra.mxu0 %v42
  %70 = vmatprep.subr.mxu0 0.0
  %71 = vmatpush1.msra.mxu0 %v43
  %72 = vmatprep.subr.mxu0 0.0
  %73 = vmatpush1.msra.mxu0 %v44
  %74 = vmatprep.subr.mxu0 0.0
  %75 = vmatpush1.msra.mxu0 %v45
  %76 = vmatprep.subr.mxu0 0.0
  %77 = vmatpush1.msra.mxu0 %v46
  %78 = vmatprep.subr.mxu0 0.0
  %79 = vmatpush1.msra.mxu0 %v47
  %80 = vmatprep.subr.mxu0 0.0
  %81 = vmatpush1.msra.mxu0 %v48
  %82 = vmatprep.subr.mxu0 0.0
  %83 = vmatpush1.msra.mxu0 %v49
  %84 = vmatprep.subr.mxu0 0.0
  %85 = vmatpush1.msra.mxu0 %v50
  %86 = vmatprep.subr.mxu0 0.0
  %87 = vmatpush1.msra.mxu0 %v51
  %88 = vmatprep.subr.mxu0 0.0
  %89 = vmatpush1.msra.mxu0 %v52
  %90 = vmatprep.subr.mxu0 0.0
  %91 = vmatpush1.msra.mxu0 %v53
  %92 = vmatprep.subr.mxu0 0.0
  %93 = vmatpush1.msra.mxu0 %v54
  %94 = vmatprep.subr.mxu0 0.0
  %95 = vmatpush1.msra.mxu0 0.0
  %96 = vmatprep.subr.mxu0 0.0
  %97 = vmatpush1.msra.mxu0 0.0
  %98 = vmatprep.subr.mxu0 0.0
  %99 = vmatpush1.msra.mxu0 0.0
  %100 = vmatprep.subr.mxu0 0.0
  %101 = vmatpush1.msra.mxu0 0.0
  %102 = vmatprep.subr.mxu0 0.0
  %103 = vmatpush1.msra.mxu0 0.0
  %104 = vmatprep.subr.mxu0 0.0
  %105 = vmatpush1.msra.mxu0 0.0
  %106 = vmatprep.subr.mxu0 0.0
  %107 = vmatpush1.msra.mxu0 0.0
  %108 = vmatprep.subr.mxu0 0.0
  %109 = vmatpush1.msra.mxu0 0.0
  %110 = vmatprep.subr.mxu0 0.0
  %111 = vmatpush1.msra.mxu0 0.0
  %112 = vmatprep.subr.mxu0 0.0
  %113 = vmatpush1.msra.mxu0 0.0
  %114 = vmatprep.subr.mxu0 0.0
  %115 = vmatpush1.msra.mxu0 0.0
  %116 = vmatprep.subr.mxu0 0.0
  %117 = vmatpush1.msra.mxu0 0.0
  %118 = vmatprep.subr.mxu0 0.0
  %119 = vmatpush1.msra.mxu0 0.0
  %120 = vmatprep.subr.mxu0 0.0
  %121 = vmatpush1.msra.mxu0 0.0
  %122 = vmatprep.subr.mxu0 0.0
  %123 = vmatpush1.msra.mxu0 0.0
  %124 = vmatprep.subr.mxu0 0.0
  %125 = vmatpush1.msra.mxu0 0.0
  %126 = vmatprep.mubr.f32.mxu0 0.0
  %127 = vmatmul.mubr.f32.gmra.mrb[0].mxu0 %v26
  %v128 = vpop.f32.mrb[0].mxu0
  %v129 = vadd.f32 %v60, %v128
  %v130 = vpop.f32.mrb[0].mxu0
  %131 = vmatprep.mubr.f32.mxu0 0.0
  %132 = vmatmul.mubr.f32.gmra.mrb[0].mxu0 %v27
  %v133 = vpop.f32.mrb[0].mxu0
  %v134 = vadd.f32 %v60, %v133
  %v135 = vpop.f32.mrb[0].mxu0
  %136 = vmatprep.mubr.f32.mxu0 0.0
  %137 = vmatmul.mubr.f32.gmra.mrb[0].mxu0 %v28
  %v138 = vpop.f32.mrb[0].mxu0
  %v139 = vadd.f32 %v60, %v138
  %v140 = vpop.f32.mrb[0].mxu0
  %141 = vmatprep.mubr.f32.mxu0 0.0
  %142 = vmatmul.mubr.f32.gmra.mrb[0].mxu0 %v29
  %v143 = vpop.f32.mrb[0].mxu0
  %v144 = vadd.f32 %v60, %v143
  %v145 = vpop.f32.mrb[0].mxu0
  %146 = vmatprep.mubr.f32.mxu0 0.0
  %147 = vmatmul.mubr.f32.gmra.mrb[0].mxu0 %v30
  %v148 = vpop.f32.mrb[0].mxu0
  %v149 = vadd.f32 %v60, %v148
  %v150 = vpop.f32.mrb[0].mxu0
  %151 = vmatprep.mubr.f32.mxu0 0.0
  %152 = vmatmul.mubr.f32.gmra.mrb[0].mxu0 %v31
  %v153 = vpop.f32.mrb[0].mxu0
  %v154 = vadd.f32 %v60, %v153
  %v155 = vpop.f32.mrb[0].mxu0
  %156 = vmatprep.mubr.f32.mxu0 0.0
  %157 = vmatmul.mubr.f32.gmra.mrb[0].mxu0 %v32
  %v158 = vpop.f32.mrb[0].mxu0
  %v159 = vadd.f32 %v60, %v158
  %v160 = vpop.f32.mrb[0].mxu0
  %161 = vmatprep.mubr.f32.mxu0 0.0
  %162 = vmatmul.mubr.f32.gmra.mrb[0].mxu0 %v33
  %v163 = vpop.f32.mrb[0].mxu0
  %v164 = vadd.f32 %v60, %v163
  %v165 = vpop.f32.mrb[0].mxu0
  %166 = vmatprep.mubr.f32.mxu0 0.0
  %167 = vmatmul.mubr.f32.gmra.mrb[0].mxu0 %v34
  %v168 = vpop.f32.mrb[0].mxu0
  %v169 = vadd.f32 %v60, %v168
  %v170 = vpop.f32.mrb[0].mxu0
  %171 = vmatprep.mubr.f32.mxu0 0.0
  %172 = vmatmul.mubr.f32.gmra.mrb[0].mxu0 %v35
  %v173 = vpop.f32.mrb[0].mxu0
  %v174 = vadd.f32 %v60, %v173
  %v175 = vpop.f32.mrb[0].mxu0
  %176 = vmatprep.mubr.f32.mxu0 0.0
  %177 = vmatmul.mubr.f32.gmra.mrb[0].mxu0 %v36
  %v178 = vpop.f32.mrb[0].mxu0
  %v179 = vadd.f32 %v60, %v178
  %v180 = vpop.f32.mrb[0].mxu0
  %181 = vmatprep.mubr.f32.mxu0 0.0
  %182 = vmatmul.mubr.f32.gmra.mrb[0].mxu0 %v37
  %v183 = vpop.f32.mrb[0].mxu0
  %v184 = vadd.f32 %v60, %v183
  %v185 = vpop.f32.mrb[0].mxu0
  %186 = vmatprep.mubr.f32.mxu0 0.0
  %187 = vmatmul.mubr.f32.gmra.mrb[0].mxu0 %v38
  %v188 = vpop.f32.mrb[0].mxu0
  %v189 = vadd.f32 %v60, %v188
  %v190 = vpop.f32.mrb[0].mxu0
  %191 = vdwg.mxu0
  %192 = vst [vmem:[#allocation2] sm:$0xff] %v129
  %193 = vst [vmem:[#allocation2 + $0x8] sm:$0xff] %v134
  %194 = vst [vmem:[#allocation2 + $0x10] sm:$0xff] %v139
  %195 = vst [vmem:[#allocation2 + $0x18] sm:$0xff] %v144
  %196 = vst [vmem:[#allocation2 + $0x20] sm:$0xff] %v149
  %197 = vst [vmem:[#allocation2 + $0x28] sm:$0xff] %v154
  %198 = vst [vmem:[#allocation2 + $0x30] sm:$0xff] %v159
  %199 = vst [vmem:[#allocation2 + $0x38] sm:$0xff] %v164
  %200 = vst [vmem:[#allocation2 + $0x40] sm:$0xff] %v169
  %201 = vst [vmem:[#allocation2 + $0x48] sm:$0xff] %v174
  %202 = vst [vmem:[#allocation2 + $0x50] sm:$0xff] %v179
  %203 = vst [vmem:[#allocation2 + $0x58] sm:$0xff] %v184
  %204 = vst [vmem:[#allocation2 + $0x60] sm:$0xff] %v189
  %v205 = vld [vmem:[%s3] sm:$0xff]
  %v206 = vld [vmem:[%s3 + $0x8] sm:$0xff]
  %v207 = vld [vmem:[%s3 + $0x10] sm:$0xff]
  %v208 = vld [vmem:[%s3 + $0x18] sm:$0xff]
  %v209 = vld [vmem:[%s3 + $0x20] sm:$0xff]
  %v210 = vld [vmem:[%s3 + $0x28] sm:$0xff]
  %v211 = vld [vmem:[%s3 + $0x30] sm:$0xff]
  %v212 = vld [vmem:[%s3 + $0x38] sm:$0xff]
  %v213 = vld [vmem:[%s3 + $0x40] sm:$0xff]
  %v214 = vld [vmem:[%s3 + $0x48] sm:$0xff]
  %v215 = vld [vmem:[%s3 + $0x50] sm:$0xff]
  %v216 = vld [vmem:[%s3 + $0x58] sm:$0xff]
  %v217 = vld [vmem:[%s3 + $0x60] sm:$0xff]
  %v218 = vld [vmem:[%s3 + $0x68] sm:$0xff]
  %v219 = vld [vmem:[%s3 + $0x70] sm:$0xff]
  %v220 = vld [vmem:[%s3 + $0x78] sm:$0xff]
  %v221 = vld [vmem:[%s4] sm:$0x1]
  %v222 = vld [vmem:[%s5] sm:$0x1]
  loop: start=0, step=1, limit=13
  $region26: #{actor_rollout.1} parent=0 // loop_pre_header
    _
  $region27: #{actor_rollout.1} parent=0 // loop_header
    %s224 = sphi 0, %s228
    %p225 = scmp.ge.s32.totalorder %s224, 13
    %v229 = vphi %v222, %v885
  $region28: #{actor_rollout.1} parent=0 // loop_header_branch
    %227 = sbr.rel (%p225) target = $region32
  $region29: #{actor_rollout.1} parent=0 // loop_body
    %s230 = smul.u32 %s224, 8
    %s231 = scalar_lea.vmem [#allocation2], %s230
    %v232 = vld [vmem:[%s231] sm:$0x1]
    %v233 = vmul.f32 %v229, 0.95
    %v234 = vadd.f32 %v233, %v232
    %vm235 = vcmp.gt.f32.partialorder %v229, 1.0
    %v236 = vsel %vm235, 1.0, 0.0
    %v237 = vsub.f32 %v234, %v236
    %vm238 = vcmp.gt.f32.partialorder %v237, 1.0
    %v239 = vsel %vm238, 1.0, 0.0
    %240 = vmatprep.subr.mxu0 0.0
    %241 = vmatpush1.msra.mxu0 %v205
    %242 = vmatprep.subr.mxu0 0.0
    %243 = vmatpush1.msra.mxu0 %v206
    %244 = vmatprep.subr.mxu0 0.0
    %245 = vmatpush1.msra.mxu0 %v207
    %246 = vmatprep.subr.mxu0 0.0
    %247 = vmatpush1.msra.mxu0 %v208
    %248 = vmatprep.subr.mxu0 0.0
    %249 = vmatpush1.msra.mxu0 %v209
    %250 = vmatprep.subr.mxu0 0.0
    %251 = vmatpush1.msra.mxu0 %v210
    %252 = vmatprep.subr.mxu0 0.0
    %253 = vmatpush1.msra.mxu0 %v211
    %254 = vmatprep.subr.mxu0 0.0
    %255 = vmatpush1.msra.mxu0 %v212
    %256 = vmatprep.subr.mxu0 0.0
    %257 = vmatpush1.msra.mxu0 %v213
    %258 = vmatprep.subr.mxu0 0.0
    %259 = vmatpush1.msra.mxu0 %v214
    %260 = vmatprep.subr.mxu0 0.0
    %261 = vmatpush1.msra.mxu0 %v215
    %262 = vmatprep.subr.mxu0 0.0
    %263 = vmatpush1.msra.mxu0 %v216
    %264 = vmatprep.subr.mxu0 0.0
    %265 = vmatpush1.msra.mxu0 %v217
    %266 = vmatprep.subr.mxu0 0.0
    %267 = vmatpush1.msra.mxu0 %v218
    %268 = vmatprep.subr.mxu0 0.0
    %269 = vmatpush1.msra.mxu0 %v219
    %270 = vmatprep.subr.mxu0 0.0
    %271 = vmatpush1.msra.mxu0 %v220
    %272 = vmatprep.subr.mxu0 0.0
    %273 = vmatpush1.msra.mxu0 0.0
    %274 = vmatprep.subr.mxu0 0.0
    %275 = vmatpush1.msra.mxu0 0.0
    %276 = vmatprep.subr.mxu0 0.0
    %277 = vmatpush1.msra.mxu0 0.0
    %278 = vmatprep.subr.mxu0 0.0
    %279 = vmatpush1.msra.mxu0 0.0
    %280 = vmatprep.subr.mxu0 0.0
    %281 = vmatpush1.msra.mxu0 0.0
    %282 = vmatprep.subr.mxu0 0.0
    %283 = vmatpush1.msra.mxu0 0.0
    %284 = vmatprep.subr.mxu0 0.0
    %285 = vmatpush1.msra.mxu0 0.0
    %286 = vmatprep.subr.mxu0 0.0
    %287 = vmatpush1.msra.mxu0 0.0
    %288 = vmatprep.subr.mxu0 0.0
    %289 = vmatpush1.msra.mxu0 0.0
    %290 = vmatprep.subr.mxu0 0.0
    %291 = vmatpush1.msra.mxu0 0.0
    %292 = vmatprep.subr.mxu0 0.0
    %293 = vmatpush1.msra.mxu0 0.0
    %294 = vmatprep.subr.mxu0 0.0
    %295 = vmatpush1.msra.mxu0 0.0
    %296 = vmatprep.subr.mxu0 0.0
    %297 = vmatpush1.msra.mxu0 0.0
    %298 = vmatprep.subr.mxu0 0.0
    %299 = vmatpush1.msra.mxu0 0.0
    %300 = vmatprep.subr.mxu0 0.0
    %301 = vmatpush1.msra.mxu0 0.0
    %302 = vmatprep.subr.mxu0 0.0
    %303 = vmatpush1.msra.mxu0 0.0
    %304 = vmatprep.mubr.f32.mxu0 0.0
    %305 = vmatmul.mubr.f32.gmra.mrb[0].mxu0 %v239
    %v306 = vpop.f32.mrb[0].mxu0
    %v307 = vadd.f32 %v221, %v306
    %v308 = vpop.f32.mrb[0].mxu0
    %309 = vdwg.mxu0
    %v310 = vmul.f32 %v237, 0.95
    %v311 = vadd.f32 %v310, %v307
    %vm312 = vcmp.gt.f32.partialorder %v311, 1.0
    %v313 = vsel %vm312, 1.0, 0.0
    %s314 = sadd.s32 %s230, 1
    %s315 = scalar_lea.vmem [#allocation2], %s314
    %v316 = vld [vmem:[%s315] sm:$0x1]
    %v317 = vmul.f32 %v311, 0.95
    %v318 = vadd.f32 %v317, %v316
    %v319 = vsub.f32 %v318, %v313
    %vm320 = vcmp.gt.f32.partialorder %v319, 1.0
    %v321 = vsel %vm320, 1.0, 0.0
    %322 = vmatprep.subr.mxu0 0.0
    %323 = vmatpush1.msra.mxu0 %v205
    %324 = vmatprep.subr.mxu0 0.0
    %325 = vmatpush1.msra.mxu0 %v206
    %326 = vmatprep.subr.mxu0 0.0
    %327 = vmatpush1.msra.mxu0 %v207
    %328 = vmatprep.subr.mxu0 0.0
    %329 = vmatpush1.msra.mxu0 %v208
    %330 = vmatprep.subr.mxu0 0.0
    %331 = vmatpush1.msra.mxu0 %v209
    %332 = vmatprep.subr.mxu0 0.0
    %333 = vmatpush1.msra.mxu0 %v210
    %334 = vmatprep.subr.mxu0 0.0
    %335 = vmatpush1.msra.mxu0 %v211
    %336 = vmatprep.subr.mxu0 0.0
    %337 = vmatpush1.msra.mxu0 %v212
    %338 = vmatprep.subr.mxu0 0.0
    %339 = vmatpush1.msra.mxu0 %v213
    %340 = vmatprep.subr.mxu0 0.0
    %341 = vmatpush1.msra.mxu0 %v214
    %342 = vmatprep.subr.mxu0 0.0
    %343 = vmatpush1.msra.mxu0 %v215
    %344 = vmatprep.subr.mxu0 0.0
    %345 = vmatpush1.msra.mxu0 %v216
    %346 = vmatprep.subr.mxu0 0.0
    %347 = vmatpush1.msra.mxu0 %v217
    %348 = vmatprep.subr.mxu0 0.0
    %349 = vmatpush1.msra.mxu0 %v218
    %350 = vmatprep.subr.mxu0 0.0
    %351 = vmatpush1.msra.mxu0 %v219
    %352 = vmatprep.subr.mxu0 0.0
    %353 = vmatpush1.msra.mxu0 %v220
    %354 = vmatprep.subr.mxu0 0.0
    %355 = vmatpush1.msra.mxu0 0.0
    %356 = vmatprep.subr.mxu0 0.0
    %357 = vmatpush1.msra.mxu0 0.0
    %358 = vmatprep.subr.mxu0 0.0
    %359 = vmatpush1.msra.mxu0 0.0
    %360 = vmatprep.subr.mxu0 0.0
    %361 = vmatpush1.msra.mxu0 0.0
    %362 = vmatprep.subr.mxu0 0.0
    %363 = vmatpush1.msra.mxu0 0.0
    %364 = vmatprep.subr.mxu0 0.0
    %365 = vmatpush1.msra.mxu0 0.0
    %366 = vmatprep.subr.mxu0 0.0
    %367 = vmatpush1.msra.mxu0 0.0
    %368 = vmatprep.subr.mxu0 0.0
    %369 = vmatpush1.msra.mxu0 0.0
    %370 = vmatprep.subr.mxu0 0.0
    %371 = vmatpush1.msra.mxu0 0.0
    %372 = vmatprep.subr.mxu0 0.0
    %373 = vmatpush1.msra.mxu0 0.0
    %374 = vmatprep.subr.mxu0 0.0
    %375 = vmatpush1.msra.mxu0 0.0
    %376 = vmatprep.subr.mxu0 0.0
    %377 = vmatpush1.msra.mxu0 0.0
    %378 = vmatprep.subr.mxu0 0.0
    %379 = vmatpush1.msra.mxu0 0.0
    %380 = vmatprep.subr.mxu0 0.0
    %381 = vmatpush1.msra.mxu0 0.0
    %382 = vmatprep.subr.mxu0 0.0
    %383 = vmatpush1.msra.mxu0 0.0
    %384 = vmatprep.subr.mxu0 0.0
    %385 = vmatpush1.msra.mxu0 0.0
    %386 = vmatprep.mubr.f32.mxu0 0.0
    %387 = vmatmul.mubr.f32.gmra.mrb[0].mxu0 %v321
    %v388 = vpop.f32.mrb[0].mxu0
    %v389 = vadd.f32 %v221, %v388
    %v390 = vpop.f32.mrb[0].mxu0
    %391 = vdwg.mxu0
    %v392 = vmul.f32 %v319, 0.95
    %v393 = vadd.f32 %v392, %v389
    %vm394 = vcmp.gt.f32.partialorder %v393, 1.0
    %v395 = vsel %vm394, 1.0, 0.0
    %s396 = sadd.s32 %s230, 2
    %s397 = scalar_lea.vmem [#allocation2], %s396
    %v398 = vld [vmem:[%s397] sm:$0x1]
    %v399 = vmul.f32 %v393, 0.95
    %v400 = vadd.f32 %v399, %v398
    %v401 = vsub.f32 %v400, %v395
    %vm402 = vcmp.gt.f32.partialorder %v401, 1.0
    %v403 = vsel %vm402, 1.0, 0.0
    %404 = vmatprep.subr.mxu0 0.0
    %405 = vmatpush1.msra.mxu0 %v205
    %406 = vmatprep.subr.mxu0 0.0
    %407 = vmatpush1.msra.mxu0 %v206
    %408 = vmatprep.subr.mxu0 0.0
    %409 = vmatpush1.msra.mxu0 %v207
    %410 = vmatprep.subr.mxu0 0.0
    %411 = vmatpush1.msra.mxu0 %v208
    %412 = vmatprep.subr.mxu0 0.0
    %413 = vmatpush1.msra.mxu0 %v209
    %414 = vmatprep.subr.mxu0 0.0
    %415 = vmatpush1.msra.mxu0 %v210
    %416 = vmatprep.subr.mxu0 0.0
    %417 = vmatpush1.msra.mxu0 %v211
    %418 = vmatprep.subr.mxu0 0.0
    %419 = vmatpush1.msra.mxu0 %v212
    %420 = vmatprep.subr.mxu0 0.0
    %421 = vmatpush1.msra.mxu0 %v213
    %422 = vmatprep.subr.mxu0 0.0
    %423 = vmatpush1.msra.mxu0 %v214
    %424 = vmatprep.subr.mxu0 0.0
    %425 = vmatpush1.msra.mxu0 %v215
    %426 = vmatprep.subr.mxu0 0.0
    %427 = vmatpush1.msra.mxu0 %v216
    %428 = vmatprep.subr.mxu0 0.0
    %429 = vmatpush1.msra.mxu0 %v217
    %430 = vmatprep.subr.mxu0 0.0
    %431 = vmatpush1.msra.mxu0 %v218
    %432 = vmatprep.subr.mxu0 0.0
    %433 = vmatpush1.msra.mxu0 %v219
    %434 = vmatprep.subr.mxu0 0.0
    %435 = vmatpush1.msra.mxu0 %v220
    %436 = vmatprep.subr.mxu0 0.0
    %437 = vmatpush1.msra.mxu0 0.0
    %438 = vmatprep.subr.mxu0 0.0
    %439 = vmatpush1.msra.mxu0 0.0
    %440 = vmatprep.subr.mxu0 0.0
    %441 = vmatpush1.msra.mxu0 0.0
    %442 = vmatprep.subr.mxu0 0.0
    %443 = vmatpush1.msra.mxu0 0.0
    %444 = vmatprep.subr.mxu0 0.0
    %445 = vmatpush1.msra.mxu0 0.0
    %446 = vmatprep.subr.mxu0 0.0
    %447 = vmatpush1.msra.mxu0 0.0
    %448 = vmatprep.subr.mxu0 0.0
    %449 = vmatpush1.msra.mxu0 0.0
    %450 = vmatprep.subr.mxu0 0.0
    %451 = vmatpush1.msra.mxu0 0.0
    %452 = vmatprep.subr.mxu0 0.0
    %453 = vmatpush1.msra.mxu0 0.0
    %454 = vmatprep.subr.mxu0 0.0
    %455 = vmatpush1.msra.mxu0 0.0
    %456 = vmatprep.subr.mxu0 0.0
    %457 = vmatpush1.msra.mxu0 0.0
    %458 = vmatprep.subr.mxu0 0.0
    %459 = vmatpush1.msra.mxu0 0.0
    %460 = vmatprep.subr.mxu0 0.0
    %461 = vmatpush1.msra.mxu0 0.0
    %462 = vmatprep.subr.mxu0 0.0
    %463 = vmatpush1.msra.mxu0 0.0
    %464 = vmatprep.subr.mxu0 0.0
    %465 = vmatpush1.msra.mxu0 0.0
    %466 = vmatprep.subr.mxu0 0.0
    %467 = vmatpush1.msra.mxu0 0.0
    %468 = vmatprep.mubr.f32.mxu0 0.0
    %469 = vmatmul.mubr.f32.gmra.mrb[0].mxu0 %v403
    %v470 = vpop.f32.mrb[0].mxu0
    %v471 = vadd.f32 %v221, %v470
    %v472 = vpop.f32.mrb[0].mxu0
    %473 = vdwg.mxu0
    %v474 = vmul.f32 %v401, 0.95
    %v475 = vadd.f32 %v474, %v471
    %vm476 = vcmp.gt.f32.partialorder %v475, 1.0
    %v477 = vsel %vm476, 1.0, 0.0
    %s478 = sadd.s32 %s230, 3
    %s479 = scalar_lea.vmem [#allocation2], %s478
    %v480 = vld [vmem:[%s479] sm:$0x1]
    %v481 = vmul.f32 %v475, 0.95
    %v482 = vadd.f32 %v481, %v480
    %v483 = vsub.f32 %v482, %v477
    %vm484 = vcmp.gt.f32.partialorder %v483, 1.0
    %v485 = vsel %vm484, 1.0, 0.0
    %486 = vmatprep.subr.mxu0 0.0
    %487 = vmatpush1.msra.mxu0 %v205
    %488 = vmatprep.subr.mxu0 0.0
    %489 = vmatpush1.msra.mxu0 %v206
    %490 = vmatprep.subr.mxu0 0.0
    %491 = vmatpush1.msra.mxu0 %v207
    %492 = vmatprep.subr.mxu0 0.0
    %493 = vmatpush1.msra.mxu0 %v208
    %494 = vmatprep.subr.mxu0 0.0
    %495 = vmatpush1.msra.mxu0 %v209
    %496 = vmatprep.subr.mxu0 0.0
    %497 = vmatpush1.msra.mxu0 %v210
    %498 = vmatprep.subr.mxu0 0.0
    %499 = vmatpush1.msra.mxu0 %v211
    %500 = vmatprep.subr.mxu0 0.0
    %501 = vmatpush1.msra.mxu0 %v212
    %502 = vmatprep.subr.mxu0 0.0
    %503 = vmatpush1.msra.mxu0 %v213
    %504 = vmatprep.subr.mxu0 0.0
    %505 = vmatpush1.msra.mxu0 %v214
    %506 = vmatprep.subr.mxu0 0.0
    %507 = vmatpush1.msra.mxu0 %v215
    %508 = vmatprep.subr.mxu0 0.0
    %509 = vmatpush1.msra.mxu0 %v216
    %510 = vmatprep.subr.mxu0 0.0
    %511 = vmatpush1.msra.mxu0 %v217
    %512 = vmatprep.subr.mxu0 0.0
    %513 = vmatpush1.msra.mxu0 %v218
    %514 = vmatprep.subr.mxu0 0.0
    %515 = vmatpush1.msra.mxu0 %v219
    %516 = vmatprep.subr.mxu0 0.0
    %517 = vmatpush1.msra.mxu0 %v220
    %518 = vmatprep.subr.mxu0 0.0
    %519 = vmatpush1.msra.mxu0 0.0
    %520 = vmatprep.subr.mxu0 0.0
    %521 = vmatpush1.msra.mxu0 0.0
    %522 = vmatprep.subr.mxu0 0.0
    %523 = vmatpush1.msra.mxu0 0.0
    %524 = vmatprep.subr.mxu0 0.0
    %525 = vmatpush1.msra.mxu0 0.0
    %526 = vmatprep.subr.mxu0 0.0
    %527 = vmatpush1.msra.mxu0 0.0
    %528 = vmatprep.subr.mxu0 0.0
    %529 = vmatpush1.msra.mxu0 0.0
    %530 = vmatprep.subr.mxu0 0.0
    %531 = vmatpush1.msra.mxu0 0.0
    %532 = vmatprep.subr.mxu0 0.0
    %533 = vmatpush1.msra.mxu0 0.0
    %534 = vmatprep.subr.mxu0 0.0
    %535 = vmatpush1.msra.mxu0 0.0
    %536 = vmatprep.subr.mxu0 0.0
    %537 = vmatpush1.msra.mxu0 0.0
    %538 = vmatprep.subr.mxu0 0.0
    %539 = vmatpush1.msra.mxu0 0.0
    %540 = vmatprep.subr.mxu0 0.0
    %541 = vmatpush1.msra.mxu0 0.0
    %542 = vmatprep.subr.mxu0 0.0
    %543 = vmatpush1.msra.mxu0 0.0
    %544 = vmatprep.subr.mxu0 0.0
    %545 = vmatpush1.msra.mxu0 0.0
    %546 = vmatprep.subr.mxu0 0.0
    %547 = vmatpush1.msra.mxu0 0.0
    %548 = vmatprep.subr.mxu0 0.0
    %549 = vmatpush1.msra.mxu0 0.0
    %550 = vmatprep.mubr.f32.mxu0 0.0
    %551 = vmatmul.mubr.f32.gmra.mrb[0].mxu0 %v485
    %v552 = vpop.f32.mrb[0].mxu0
    %v553 = vadd.f32 %v221, %v552
    %v554 = vpop.f32.mrb[0].mxu0
    %555 = vdwg.mxu0
    %v556 = vmul.f32 %v483, 0.95
    %v557 = vadd.f32 %v556, %v553
    %vm558 = vcmp.gt.f32.partialorder %v557, 1.0
    %v559 = vsel %vm558, 1.0, 0.0
    %s560 = sadd.s32 %s230, 4
    %s561 = scalar_lea.vmem [#allocation2], %s560
    %v562 = vld [vmem:[%s561] sm:$0x1]
    %v563 = vmul.f32 %v557, 0.95
    %v564 = vadd.f32 %v563, %v562
    %v565 = vsub.f32 %v564, %v559
    %vm566 = vcmp.gt.f32.partialorder %v565, 1.0
    %v567 = vsel %vm566, 1.0, 0.0
    %568 = vmatprep.subr.mxu0 0.0
    %569 = vmatpush1.msra.mxu0 %v205
    %570 = vmatprep.subr.mxu0 0.0
    %571 = vmatpush1.msra.mxu0 %v206
    %572 = vmatprep.subr.mxu0 0.0
    %573 = vmatpush1.msra.mxu0 %v207
    %574 = vmatprep.subr.mxu0 0.0
    %575 = vmatpush1.msra.mxu0 %v208
    %576 = vmatprep.subr.mxu0 0.0
    %577 = vmatpush1.msra.mxu0 %v209
    %578 = vmatprep.subr.mxu0 0.0
    %579 = vmatpush1.msra.mxu0 %v210
    %580 = vmatprep.subr.mxu0 0.0
    %581 = vmatpush1.msra.mxu0 %v211
    %582 = vmatprep.subr.mxu0 0.0
    %583 = vmatpush1.msra.mxu0 %v212
    %584 = vmatprep.subr.mxu0 0.0
    %585 = vmatpush1.msra.mxu0 %v213
    %586 = vmatprep.subr.mxu0 0.0
    %587 = vmatpush1.msra.mxu0 %v214
    %588 = vmatprep.subr.mxu0 0.0
    %589 = vmatpush1.msra.mxu0 %v215
    %590 = vmatprep.subr.mxu0 0.0
    %591 = vmatpush1.msra.mxu0 %v216
    %592 = vmatprep.subr.mxu0 0.0
    %593 = vmatpush1.msra.mxu0 %v217
    %594 = vmatprep.subr.mxu0 0.0
    %595 = vmatpush1.msra.mxu0 %v218
    %596 = vmatprep.subr.mxu0 0.0
    %597 = vmatpush1.msra.mxu0 %v219
    %598 = vmatprep.subr.mxu0 0.0
    %599 = vmatpush1.msra.mxu0 %v220
    %600 = vmatprep.subr.mxu0 0.0
    %601 = vmatpush1.msra.mxu0 0.0
    %602 = vmatprep.subr.mxu0 0.0
    %603 = vmatpush1.msra.mxu0 0.0
    %604 = vmatprep.subr.mxu0 0.0
    %605 = vmatpush1.msra.mxu0 0.0
    %606 = vmatprep.subr.mxu0 0.0
    %607 = vmatpush1.msra.mxu0 0.0
    %608 = vmatprep.subr.mxu0 0.0
    %609 = vmatpush1.msra.mxu0 0.0
    %610 = vmatprep.subr.mxu0 0.0
    %611 = vmatpush1.msra.mxu0 0.0
    %612 = vmatprep.subr.mxu0 0.0
    %613 = vmatpush1.msra.mxu0 0.0
    %614 = vmatprep.subr.mxu0 0.0
    %615 = vmatpush1.msra.mxu0 0.0
    %616 = vmatprep.subr.mxu0 0.0
    %617 = vmatpush1.msra.mxu0 0.0
    %618 = vmatprep.subr.mxu0 0.0
    %619 = vmatpush1.msra.mxu0 0.0
    %620 = vmatprep.subr.mxu0 0.0
    %621 = vmatpush1.msra.mxu0 0.0
    %622 = vmatprep.subr.mxu0 0.0
    %623 = vmatpush1.msra.mxu0 0.0
    %624 = vmatprep.subr.mxu0 0.0
    %625 = vmatpush1.msra.mxu0 0.0
    %626 = vmatprep.subr.mxu0 0.0
    %627 = vmatpush1.msra.mxu0 0.0
    %628 = vmatprep.subr.mxu0 0.0
    %629 = vmatpush1.msra.mxu0 0.0
    %630 = vmatprep.subr.mxu0 0.0
    %631 = vmatpush1.msra.mxu0 0.0
    %632 = vmatprep.mubr.f32.mxu0 0.0
    %633 = vmatmul.mubr.f32.gmra.mrb[0].mxu0 %v567
    %v634 = vpop.f32.mrb[0].mxu0
    %v635 = vadd.f32 %v221, %v634
    %v636 = vpop.f32.mrb[0].mxu0
    %637 = vdwg.mxu0
    %v638 = vmul.f32 %v565, 0.95
    %v639 = vadd.f32 %v638, %v635
    %vm640 = vcmp.gt.f32.partialorder %v639, 1.0
    %v641 = vsel %vm640, 1.0, 0.0
    %s642 = sadd.s32 %s230, 5
    %s643 = scalar_lea.vmem [#allocation2], %s642
    %v644 = vld [vmem:[%s643] sm:$0x1]
    %v645 = vmul.f32 %v639, 0.95
    %v646 = vadd.f32 %v645, %v644
    %v647 = vsub.f32 %v646, %v641
    %vm648 = vcmp.gt.f32.partialorder %v647, 1.0
    %v649 = vsel %vm648, 1.0, 0.0
    %650 = vmatprep.subr.mxu0 0.0
    %651 = vmatpush1.msra.mxu0 %v205
    %652 = vmatprep.subr.mxu0 0.0
    %653 = vmatpush1.msra.mxu0 %v206
    %654 = vmatprep.subr.mxu0 0.0
    %655 = vmatpush1.msra.mxu0 %v207
    %656 = vmatprep.subr.mxu0 0.0
    %657 = vmatpush1.msra.mxu0 %v208
    %658 = vmatprep.subr.mxu0 0.0
    %659 = vmatpush1.msra.mxu0 %v209
    %660 = vmatprep.subr.mxu0 0.0
    %661 = vmatpush1.msra.mxu0 %v210
    %662 = vmatprep.subr.mxu0 0.0
    %663 = vmatpush1.msra.mxu0 %v211
    %664 = vmatprep.subr.mxu0 0.0
    %665 = vmatpush1.msra.mxu0 %v212
    %666 = vmatprep.subr.mxu0 0.0
    %667 = vmatpush1.msra.mxu0 %v213
    %668 = vmatprep.subr.mxu0 0.0
    %669 = vmatpush1.msra.mxu0 %v214
    %670 = vmatprep.subr.mxu0 0.0
    %671 = vmatpush1.msra.mxu0 %v215
    %672 = vmatprep.subr.mxu0 0.0
    %673 = vmatpush1.msra.mxu0 %v216
    %674 = vmatprep.subr.mxu0 0.0
    %675 = vmatpush1.msra.mxu0 %v217
    %676 = vmatprep.subr.mxu0 0.0
    %677 = vmatpush1.msra.mxu0 %v218
    %678 = vmatprep.subr.mxu0 0.0
    %679 = vmatpush1.msra.mxu0 %v219
    %680 = vmatprep.subr.mxu0 0.0
    %681 = vmatpush1.msra.mxu0 %v220
    %682 = vmatprep.subr.mxu0 0.0
    %683 = vmatpush1.msra.mxu0 0.0
    %684 = vmatprep.subr.mxu0 0.0
    %685 = vmatpush1.msra.mxu0 0.0
    %686 = vmatprep.subr.mxu0 0.0
    %687 = vmatpush1.msra.mxu0 0.0
    %688 = vmatprep.subr.mxu0 0.0
    %689 = vmatpush1.msra.mxu0 0.0
    %690 = vmatprep.subr.mxu0 0.0
    %691 = vmatpush1.msra.mxu0 0.0
    %692 = vmatprep.subr.mxu0 0.0
    %693 = vmatpush1.msra.mxu0 0.0
    %694 = vmatprep.subr.mxu0 0.0
    %695 = vmatpush1.msra.mxu0 0.0
    %696 = vmatprep.subr.mxu0 0.0
    %697 = vmatpush1.msra.mxu0 0.0
    %698 = vmatprep.subr.mxu0 0.0
    %699 = vmatpush1.msra.mxu0 0.0
    %700 = vmatprep.subr.mxu0 0.0
    %701 = vmatpush1.msra.mxu0 0.0
    %702 = vmatprep.subr.mxu0 0.0
    %703 = vmatpush1.msra.mxu0 0.0
    %704 = vmatprep.subr.mxu0 0.0
    %705 = vmatpush1.msra.mxu0 0.0
    %706 = vmatprep.subr.mxu0 0.0
    %707 = vmatpush1.msra.mxu0 0.0
    %708 = vmatprep.subr.mxu0 0.0
    %709 = vmatpush1.msra.mxu0 0.0
    %710 = vmatprep.subr.mxu0 0.0
    %711 = vmatpush1.msra.mxu0 0.0
    %712 = vmatprep.subr.mxu0 0.0
    %713 = vmatpush1.msra.mxu0 0.0
    %714 = vmatprep.mubr.f32.mxu0 0.0
    %715 = vmatmul.mubr.f32.gmra.mrb[0].mxu0 %v649
    %v716 = vpop.f32.mrb[0].mxu0
    %v717 = vadd.f32 %v221, %v716
    %v718 = vpop.f32.mrb[0].mxu0
    %719 = vdwg.mxu0
    %v720 = vmul.f32 %v647, 0.95
    %v721 = vadd.f32 %v720, %v717
    %vm722 = vcmp.gt.f32.partialorder %v721, 1.0
    %v723 = vsel %vm722, 1.0, 0.0
    %s724 = sadd.s32 %s230, 6
    %s725 = scalar_lea.vmem [#allocation2], %s724
    %v726 = vld [vmem:[%s725] sm:$0x1]
    %v727 = vmul.f32 %v721, 0.95
    %v728 = vadd.f32 %v727, %v726
    %v729 = vsub.f32 %v728, %v723
    %vm730 = vcmp.gt.f32.partialorder %v729, 1.0
    %v731 = vsel %vm730, 1.0, 0.0
    %732 = vmatprep.subr.mxu0 0.0
    %733 = vmatpush1.msra.mxu0 %v205
    %734 = vmatprep.subr.mxu0 0.0
    %735 = vmatpush1.msra.mxu0 %v206
    %736 = vmatprep.subr.mxu0 0.0
    %737 = vmatpush1.msra.mxu0 %v207
    %738 = vmatprep.subr.mxu0 0.0
    %739 = vmatpush1.msra.mxu0 %v208
    %740 = vmatprep.subr.mxu0 0.0
    %741 = vmatpush1.msra.mxu0 %v209
    %742 = vmatprep.subr.mxu0 0.0
    %743 = vmatpush1.msra.mxu0 %v210
    %744 = vmatprep.subr.mxu0 0.0
    %745 = vmatpush1.msra.mxu0 %v211
    %746 = vmatprep.subr.mxu0 0.0
    %747 = vmatpush1.msra.mxu0 %v212
    %748 = vmatprep.subr.mxu0 0.0
    %749 = vmatpush1.msra.mxu0 %v213
    %750 = vmatprep.subr.mxu0 0.0
    %751 = vmatpush1.msra.mxu0 %v214
    %752 = vmatprep.subr.mxu0 0.0
    %753 = vmatpush1.msra.mxu0 %v215
    %754 = vmatprep.subr.mxu0 0.0
    %755 = vmatpush1.msra.mxu0 %v216
    %756 = vmatprep.subr.mxu0 0.0
    %757 = vmatpush1.msra.mxu0 %v217
    %758 = vmatprep.subr.mxu0 0.0
    %759 = vmatpush1.msra.mxu0 %v218
    %760 = vmatprep.subr.mxu0 0.0
    %761 = vmatpush1.msra.mxu0 %v219
    %762 = vmatprep.subr.mxu0 0.0
    %763 = vmatpush1.msra.mxu0 %v220
    %764 = vmatprep.subr.mxu0 0.0
    %765 = vmatpush1.msra.mxu0 0.0
    %766 = vmatprep.subr.mxu0 0.0
    %767 = vmatpush1.msra.mxu0 0.0
    %768 = vmatprep.subr.mxu0 0.0
    %769 = vmatpush1.msra.mxu0 0.0
    %770 = vmatprep.subr.mxu0 0.0
    %771 = vmatpush1.msra.mxu0 0.0
    %772 = vmatprep.subr.mxu0 0.0
    %773 = vmatpush1.msra.mxu0 0.0
    %774 = vmatprep.subr.mxu0 0.0
    %775 = vmatpush1.msra.mxu0 0.0
    %776 = vmatprep.subr.mxu0 0.0
    %777 = vmatpush1.msra.mxu0 0.0
    %778 = vmatprep.subr.mxu0 0.0
    %779 = vmatpush1.msra.mxu0 0.0
    %780 = vmatprep.subr.mxu0 0.0
    %781 = vmatpush1.msra.mxu0 0.0
    %782 = vmatprep.subr.mxu0 0.0
    %783 = vmatpush1.msra.mxu0 0.0
    %784 = vmatprep.subr.mxu0 0.0
    %785 = vmatpush1.msra.mxu0 0.0
    %786 = vmatprep.subr.mxu0 0.0
    %787 = vmatpush1.msra.mxu0 0.0
    %788 = vmatprep.subr.mxu0 0.0
    %789 = vmatpush1.msra.mxu0 0.0
    %790 = vmatprep.subr.mxu0 0.0
    %791 = vmatpush1.msra.mxu0 0.0
    %792 = vmatprep.subr.mxu0 0.0
    %793 = vmatpush1.msra.mxu0 0.0
    %794 = vmatprep.subr.mxu0 0.0
    %795 = vmatpush1.msra.mxu0 0.0
    %796 = vmatprep.mubr.f32.mxu0 0.0
    %797 = vmatmul.mubr.f32.gmra.mrb[0].mxu0 %v731
    %v798 = vpop.f32.mrb[0].mxu0
    %v799 = vadd.f32 %v221, %v798
    %v800 = vpop.f32.mrb[0].mxu0
    %801 = vdwg.mxu0
    %v802 = vmul.f32 %v729, 0.95
    %v803 = vadd.f32 %v802, %v799
    %vm804 = vcmp.gt.f32.partialorder %v803, 1.0
    %v805 = vsel %vm804, 1.0, 0.0
    %s806 = sadd.s32 %s230, 7
    %s807 = scalar_lea.vmem [#allocation2], %s806
    %v808 = vld [vmem:[%s807] sm:$0x1]
    %v809 = vmul.f32 %v803, 0.95
    %v810 = vadd.f32 %v809, %v808
    %v811 = vsub.f32 %v810, %v805
    %vm812 = vcmp.gt.f32.partialorder %v811, 1.0
    %v813 = vsel %vm812, 1.0, 0.0
    %814 = vmatprep.subr.mxu0 0.0
    %815 = vmatpush1.msra.mxu0 %v205
    %816 = vmatprep.subr.mxu0 0.0
    %817 = vmatpush1.msra.mxu0 %v206
    %818 = vmatprep.subr.mxu0 0.0
    %819 = vmatpush1.msra.mxu0 %v207
    %820 = vmatprep.subr.mxu0 0.0
    %821 = vmatpush1.msra.mxu0 %v208
    %822 = vmatprep.subr.mxu0 0.0
    %823 = vmatpush1.msra.mxu0 %v209
    %824 = vmatprep.subr.mxu0 0.0
    %825 = vmatpush1.msra.mxu0 %v210
    %826 = vmatprep.subr.mxu0 0.0
    %827 = vmatpush1.msra.mxu0 %v211
    %828 = vmatprep.subr.mxu0 0.0
    %829 = vmatpush1.msra.mxu0 %v212
    %830 = vmatprep.subr.mxu0 0.0
    %831 = vmatpush1.msra.mxu0 %v213
    %832 = vmatprep.subr.mxu0 0.0
    %833 = vmatpush1.msra.mxu0 %v214
    %834 = vmatprep.subr.mxu0 0.0
    %835 = vmatpush1.msra.mxu0 %v215
    %836 = vmatprep.subr.mxu0 0.0
    %837 = vmatpush1.msra.mxu0 %v216
    %838 = vmatprep.subr.mxu0 0.0
    %839 = vmatpush1.msra.mxu0 %v217
    %840 = vmatprep.subr.mxu0 0.0
    %841 = vmatpush1.msra.mxu0 %v218
    %842 = vmatprep.subr.mxu0 0.0
    %843 = vmatpush1.msra.mxu0 %v219
    %844 = vmatprep.subr.mxu0 0.0
    %845 = vmatpush1.msra.mxu0 %v220
    %846 = vmatprep.subr.mxu0 0.0
    %847 = vmatpush1.msra.mxu0 0.0
    %848 = vmatprep.subr.mxu0 0.0
    %849 = vmatpush1.msra.mxu0 0.0
    %850 = vmatprep.subr.mxu0 0.0
    %851 = vmatpush1.msra.mxu0 0.0
    %852 = vmatprep.subr.mxu0 0.0
    %853 = vmatpush1.msra.mxu0 0.0
    %854 = vmatprep.subr.mxu0 0.0
    %855 = vmatpush1.msra.mxu0 0.0
    %856 = vmatprep.subr.mxu0 0.0
    %857 = vmatpush1.msra.mxu0 0.0
    %858 = vmatprep.subr.mxu0 0.0
    %859 = vmatpush1.msra.mxu0 0.0
    %860 = vmatprep.subr.mxu0 0.0
    %861 = vmatpush1.msra.mxu0 0.0
    %862 = vmatprep.subr.mxu0 0.0
    %863 = vmatpush1.msra.mxu0 0.0
    %864 = vmatprep.subr.mxu0 0.0
    %865 = vmatpush1.msra.mxu0 0.0
    %866 = vmatprep.subr.mxu0 0.0
    %867 = vmatpush1.msra.mxu0 0.0
    %868 = vmatprep.subr.mxu0 0.0
    %869 = vmatpush1.msra.mxu0 0.0
    %870 = vmatprep.subr.mxu0 0.0
    %871 = vmatpush1.msra.mxu0 0.0
    %872 = vmatprep.subr.mxu0 0.0
    %873 = vmatpush1.msra.mxu0 0.0
    %874 = vmatprep.subr.mxu0 0.0
    %875 = vmatpush1.msra.mxu0 0.0
    %876 = vmatprep.subr.mxu0 0.0
    %877 = vmatpush1.msra.mxu0 0.0
    %878 = vmatprep.mubr.f32.mxu0 0.0
    %879 = vmatmul.mubr.f32.gmra.mrb[0].mxu0 %v813
    %v880 = vpop.f32.mrb[0].mxu0
    %v881 = vadd.f32 %v221, %v880
    %v882 = vpop.f32.mrb[0].mxu0
    %883 = vdwg.mxu0
    %v884 = vmul.f32 %v811, 0.95
    %v885 = vadd.f32 %v884, %v881
    %vm886 = vcmp.gt.f32.partialorder %v885, 1.0
    %v887 = vsel %vm886, 1.0, 0.0
    %v889 = vlaneseq
    %v890 = vshrl.u32 %v889, 7
    %v891 = vsub.s32 0, %v890
    %v892 = vrot.slane %v321, %v891
    %v895 = vlaneseq
    %v896 = vshrl.u32 %v895, 7
    %v897 = vsub.s32 0, %v896
    %v898 = vrot.slane %v403, %v897
    %v901 = vlaneseq
    %v902 = vshrl.u32 %v901, 7
    %v903 = vsub.s32 0, %v902
    %v904 = vrot.slane %v485, %v903
    %v907 = vlaneseq
    %v908 = vshrl.u32 %v907, 7
    %v909 = vsub.s32 0, %v908
    %v910 = vrot.slane %v567, %v909
    %v913 = vlaneseq
    %v914 = vshrl.u32 %v913, 7
    %v915 = vsub.s32 0, %v914
    %v916 = vrot.slane %v649, %v915
    %v919 = vlaneseq
    %v920 = vshrl.u32 %v919, 7
    %v921 = vsub.s32 0, %v920
    %v922 = vrot.slane %v731, %v921
    %v925 = vlaneseq
    %v926 = vshrl.u32 %v925, 7
    %v927 = vsub.s32 0, %v926
    %v928 = vrot.slane %v813, %v927
    %vm930 = vcmask 1040384
    %v931 = vsel %vm930, %v239, %v892
    %vm932 = vcmask 1041408
    %v933 = vsel %vm932, %v931, %v898
    %vm934 = vcmask 1042432
    %v935 = vsel %vm934, %v933, %v904
    %vm936 = vcmask 1043456
    %v937 = vsel %vm936, %v935, %v910
    %vm938 = vcmask 1044480
    %v939 = vsel %vm938, %v937, %v916
    %vm940 = vcmask 1045504
    %v941 = vsel %vm940, %v939, %v922
    %vm942 = vcmask 1046528
    %v943 = vsel %vm942, %v941, %v928
    %s944 = scalar_lea.vmem %s6, %s230
    %945 = vst [vmem:[%s944] sm:$0xff] %v943
    %v947 = vlaneseq
    %v948 = vshrl.u32 %v947, 7
    %v949 = vsub.s32 0, %v948
    %v950 = vrot.slane %v395, %v949
    %v953 = vlaneseq
    %v954 = vshrl.u32 %v953, 7
    %v955 = vsub.s32 0, %v954
    %v956 = vrot.slane %v477, %v955
    %v959 = vlaneseq
    %v960 = vshrl.u32 %v959, 7
    %v961 = vsub.s32 0, %v960
    %v962 = vrot.slane %v559, %v961
    %v965 = vlaneseq
    %v966 = vshrl.u32 %v965, 7
    %v967 = vsub.s32 0, %v966
    %v968 = vrot.slane %v641, %v967
    %v971 = vlaneseq
    %v972 = vshrl.u32 %v971, 7
    %v973 = vsub.s32 0, %v972
    %v974 = vrot.slane %v723, %v973
    %v977 = vlaneseq
    %v978 = vshrl.u32 %v977, 7
    %v979 = vsub.s32 0, %v978
    %v980 = vrot.slane %v805, %v979
    %v983 = vlaneseq
    %v984 = vshrl.u32 %v983, 7
    %v985 = vsub.s32 0, %v984
    %v986 = vrot.slane %v887, %v985
    %v988 = vsel %vm930, %v313, %v950
    %v989 = vsel %vm932, %v988, %v956
    %v990 = vsel %vm934, %v989, %v962
    %v991 = vsel %vm936, %v990, %v968
    %v992 = vsel %vm938, %v991, %v974
    %v993 = vsel %vm940, %v992, %v980
    %v994 = vsel %vm942, %v993, %v986
    %s995 = scalar_lea.vmem %s7, %s230
    %996 = vst [vmem:[%s995] sm:$0xff] %v994
    %v998 = vlaneseq
    %v999 = vshrl.u32 %v998, 7
    %v1000 = vsub.s32 0, %v999
    %v1001 = vrot.slane %v393, %v1000
    %v1004 = vlaneseq
    %v1005 = vshrl.u32 %v1004, 7
    %v1006 = vsub.s32 0, %v1005
    %v1007 = vrot.slane %v475, %v1006
    %v1010 = vlaneseq
    %v1011 = vshrl.u32 %v1010, 7
    %v1012 = vsub.s32 0, %v1011
    %v1013 = vrot.slane %v557, %v1012
    %v1016 = vlaneseq
    %v1017 = vshrl.u32 %v1016, 7
    %v1018 = vsub.s32 0, %v1017
    %v1019 = vrot.slane %v639, %v1018
    %v1022 = vlaneseq
    %v1023 = vshrl.u32 %v1022, 7
    %v1024 = vsub.s32 0, %v1023
    %v1025 = vrot.slane %v721, %v1024
    %v1028 = vlaneseq
    %v1029 = vshrl.u32 %v1028, 7
    %v1030 = vsub.s32 0, %v1029
    %v1031 = vrot.slane %v803, %v1030
    %v1034 = vlaneseq
    %v1035 = vshrl.u32 %v1034, 7
    %v1036 = vsub.s32 0, %v1035
    %v1037 = vrot.slane %v885, %v1036
    %v1039 = vsel %vm930, %v311, %v1001
    %v1040 = vsel %vm932, %v1039, %v1007
    %v1041 = vsel %vm934, %v1040, %v1013
    %v1042 = vsel %vm936, %v1041, %v1019
    %v1043 = vsel %vm938, %v1042, %v1025
    %v1044 = vsel %vm940, %v1043, %v1031
    %v1045 = vsel %vm942, %v1044, %v1037
    %s1046 = scalar_lea.vmem %s8, %s230
    %1047 = vst [vmem:[%s1046] sm:$0xff] %v1045
  $region30: #{actor_rollout.1} parent=0 // loop_footer
    %s228 = sadd.s32 1, %s224
  $region31: #{actor_rollout.1} parent=0 // loop_footer_branch
    %223 = sbr.rel target = $region27
  $region32: #{actor_rollout.1} parent=0 // loop_exit
    _
  // Predicated region
  $region33: #{actor_rollout.1} parent=0 // pred_check
    _
  $region34: #{actor_rollout.1} parent=0 // pred_check_branch
    %1049 = sbr.rel (0) target = $region36
  $region35: #{actor_rollout.1} parent=0 // pred_region
    _
  $region36: #{actor_rollout.1} parent=0 // pred_fallthru
    _
  // Predicated region
  $region37: #{actor_rollout.1} parent=0 // pred_check
    _
  $region38: #{actor_rollout.1} parent=0 // pred_check_branch
    %1051 = sbr.rel (0) target = $region40
  $region39: #{actor_rollout.1} parent=0 // pred_region
    _
  $region40: #{actor_rollout.1} parent=0 // pred_fallthru
    _
  // Predicated region
  $region41: #{actor_rollout.1} parent=0 // pred_check
    _
  $region42: #{actor_rollout.1} parent=0 // pred_check_branch
    %1053 = sbr.rel (0) target = $region44
  $region43: #{actor_rollout.1} parent=0 // pred_region
    _
  $region44: #{actor_rollout.1} parent=0 // pred_fallthru
    _
  // Predicated region
  $region45: #{actor_rollout.1} parent=0 // pred_check
    _
  $region46: #{actor_rollout.1} parent=0 // pred_check_branch
    %1055 = sbr.rel (0) target = $region48
  $region47: #{actor_rollout.1} parent=0 // pred_region
    _
  $region48: #{actor_rollout.1} parent=0 // pred_fallthru
    _
  // Predicated region
  $region49: #{actor_rollout.1} parent=0 // pred_check
    _
  $region50: #{actor_rollout.1} parent=0 // pred_check_branch
    %1057 = sbr.rel (0) target = $region52
  $region51: #{actor_rollout.1} parent=0 // pred_region
    _
  $region52: #{actor_rollout.1} parent=0 // pred_fallthru
    _
  // Predicated region
  $region53: #{actor_rollout.1} parent=0 // pred_check
    _
  $region54: #{actor_rollout.1} parent=0 // pred_check_branch
    %1059 = sbr.rel (0) target = $region56
  $region55: #{actor_rollout.1} parent=0 // pred_region
    _
  $region56: #{actor_rollout.1} parent=0 // pred_fallthru
    _

</llo_original>
